<compile_context>
chip_gen: v7x
topology: tpu7x:2x2x1
jax: 0.10.0
libtpu: 0.0.40
codegen_flags: <defaults>
</compile_context>

<pallas_src>
import math
import functools

import jax
import jax.numpy as jnp
from jax import lax
from jax.experimental import pallas as pl
from jax.experimental.pallas import tpu as pltpu


def mha_dis_kernel(q_ref, kh_ref, vh_ref, rel_ref,
                   wq_ref, bq_ref, wo_ref, bo_ref, gamma_ref, beta_ref,
                   out_ref, *, h, d_k, d_v, ln_eps, mxu_dtype, approx_recip):
    bt, tq, d_model = q_ref.shape
    nk = kh_ref.shape[2]
    f32 = jnp.float32

    q_in = q_ref[...]                                    # (bt, tq, d_model) f32
    q2 = q_in.reshape(bt * tq, d_model)                  # leading-dim merge only
    q2m = q2.astype(mxu_dtype)

    # Q projection: one small matmul per head against the host-pre-split,
    # pre-scaled weights (wq_ref: (h, d_model, d_k), already * 1/sqrt(d_k)).
    # The head-batched layout is built with leading-axis stacks only
    # (no sub-128-lane activation slices, no minor-dim reshapes/transposes).
    qh = jnp.stack(
        [(jnp.dot(q2m, wq_ref[i], preferred_element_type=f32)
          + bq_ref[i]).reshape(bt, tq, d_k)
         for i in range(h)],
        axis=1)                                          # (bt, h, tq, d_k)
    qh = qh.reshape(bt * h, tq, d_k).astype(mxu_dtype)

    kh = kh_ref[...].reshape(bt * h, nk, d_k)            # pre-projected, mxu dtype
    vh = vh_ref[...].reshape(bt * h, nk, d_v)

    # Batched logits for all (batch, head) pairs; contraction over the last
    # dim of both operands -> no explicit K transpose.  Scale already in Wq.
    att = jnp.einsum('bqd,bkd->bqk', qh, kh, preferred_element_type=f32)
    att = att + rel_ref[...].astype(f32).reshape(bt * h, tq, nk)
    # TODO(synk): attention_mask / attention_weights are None in this config;
    #             masked_fill / multiplicative-weight branches not emitted.

    # One softmax over the whole (bt*h, tq, nk) slab (one max / one sum).
    att = att - jnp.max(att, axis=-1, keepdims=True)
    p = jnp.exp(att)
    denom = jnp.sum(p, axis=-1, keepdims=True)
    if approx_recip:
        p = p * pl.reciprocal(denom, approx=True)        # EUP slot (bf16 config)
    else:
        p = p / denom                                    # exact (f32 config)

    ctx = jnp.einsum('bqk,bkv->bqv', p.astype(mxu_dtype), vh,
                     preferred_element_type=f32)         # (bt*h, tq, d_v)

    # Head recombine in registers: accumulate the output projection per head
    # (wo_ref: (h, d_v, d_model)).  No lane concat, no VMEM scratch round trip.
    ctx4 = ctx.reshape(bt, h, tq, d_v)
    o = jnp.zeros((bt * tq, d_model), f32)
    for i in range(h):
        o = o + jnp.dot(ctx4[:, i].reshape(bt * tq, d_v).astype(mxu_dtype),
                        wo_ref[i], preferred_element_type=f32)
    o = o + bo_ref[...]

    # Residual + LayerNorm over d_model, all in f32 (v5e has no bf16 VPU/EUP).
    x = q2 + o
    mean = jnp.mean(x, axis=-1, keepdims=True)
    var = jnp.mean((x - mean) ** 2, axis=-1, keepdims=True)
    y = (x - mean) * lax.rsqrt(var + ln_eps)
    y = y * gamma_ref[...] + beta_ref[...]
    # TODO(synk): for d_model not a multiple of 128 this store is a masked
    #             partial store; a wrapper-side flatten to (b_s, nq*d_model)
    #             would make it lane-dense (moot for production d_model).
    out_ref[...] = y.reshape(out_ref.shape).astype(out_ref.dtype)


def _largest_divisor_leq(n, cap):
    cap = max(1, min(n, cap))
    for c in range(cap, 0, -1):
        if n % c == 0:
            return c
    return 1


def _pick_q_tile(nq):
    if nq <= 128:
        return nq
    for c in range(128, 7, -8):          # keep tq a multiple of 8 when tiling
        if nq % c == 0:
            return c
    return nq                            # no suitable divisor: full extent


def _m_row_target():
    """Target bt*tq (MXU M rows): 128 on v5e (128-wide MXU), 256 on v6e/v7x."""
    try:
        name = str(pltpu.get_tpu_info().chip_version).lower()
        if "5" in name:
            return 128
    except Exception:
        pass
    return 256


def _vmem_limit_bytes():
    cap = 128 * 1024 * 1024
    try:
        cap = int(pltpu.get_tpu_info().vmem_capacity_bytes)
    except Exception:
        pass
    # Leave headroom for Mosaic-internal scratch; cap well below physical
    # (v7x has only 64 MiB per TensorCore).
    return max(32 * 1024 * 1024, min(cap * 3 // 4, 112 * 1024 * 1024))


def multi_head_attention_dis(queries, keys, values, relative, params, *,
                             h, d_k, d_v, ln_eps=1e-5,
                             mxu_dtype=jnp.bfloat16,
                             batch_tile=None, q_tile=None,
                             single_buffer_params=False):
    b_s, nq, d_model = queries.shape
    nk = keys.shape[1]
    wq, bq, wk, bk, wv, bv, wo, bo, gamma, beta = params
    f32 = jnp.float32
    queries = queries.astype(f32)

    # --- host-side prep (plain XLA; weight-only / once-per-call work) -------
    scale = 1.0 / math.sqrt(d_k)
    # Fold the attention scale into the Q projection (free) and pre-split the
    # Q / O weights per head so the kernel never lane-slices activations.
    wq_h = (wq * scale).reshape(d_model, h, d_k).transpose(1, 0, 2)  # (h, dm, dk)
    bq_h = (bq * scale).reshape(h, 1, d_k)                           # (h, 1, dk) f32
    wo_h = wo.reshape(h, d_v, d_model)                               # (h, dv, dm)
    wq_h = wq_h.astype(mxu_dtype)
    wo_h = wo_h.astype(mxu_dtype)

    # K / V projections + head split hoisted out of the kernel: they are
    # independent of the q-tile, so doing them in-kernel repeats the MXU work
    # and the head relayout once per q-tile.
    def proj_heads(x, w, b, dim):
        y = jnp.einsum('bnd,df->bnf', x.astype(mxu_dtype), w.astype(mxu_dtype),
                       preferred_element_type=f32) + b
        y = y.reshape(b_s, x.shape[1], h, dim).transpose(0, 2, 1, 3)
        return y.astype(mxu_dtype)                       # (b_s, h, n, dim)

    kh = proj_heads(keys, wk, bk, d_k)
    vh = proj_heads(values, wv, bv, d_v)
    # `relative` is the largest streamed tensor (read exactly once): stream it
    # in the MXU dtype to halve its HBM traffic / VMEM block.
    rel = relative.astype(mxu_dtype)

    # --- tiling (generation-aware) -------------------------------------------
    tq = q_tile if q_tile is not None else _pick_q_tile(nq)
    if batch_tile is not None:
        bt = batch_tile
    else:
        # Prefer growing bt over tq: same MXU M-rows, smaller rel/att slab.
        bt = _largest_divisor_leq(b_s, max(1, _m_row_target() // tq))
    assert b_s % bt == 0 and nq % tq == 0

    approx_recip = (mxu_dtype != jnp.float32)
    kernel = functools.partial(mha_dis_kernel, h=h, d_k=d_k, d_v=d_v,
                               ln_eps=ln_eps, mxu_dtype=mxu_dtype,
                               approx_recip=approx_recip)

    def fixed(arr):
        zeros = (0,) * arr.ndim
        if single_buffer_params:
            # Constant index_map -> single-buffer the block to halve its VMEM
            # footprint (mainly useful on v7x's 64 MiB VMEM).
            return pl.BlockSpec(arr.shape, lambda bi, qi, _z=zeros: _z,
                                pipeline_mode=pl.Buffered(1))
        return pl.BlockSpec(arr.shape, lambda bi, qi, _z=zeros: _z)

    in_specs = [
        pl.BlockSpec((bt, tq, d_model), lambda bi, qi: (bi, qi, 0)),    # queries
        pl.BlockSpec((bt, h, nk, d_k), lambda bi, qi: (bi, 0, 0, 0)),   # K heads
        pl.BlockSpec((bt, h, nk, d_v), lambda bi, qi: (bi, 0, 0, 0)),   # V heads
        pl.BlockSpec((bt, h, tq, nk), lambda bi, qi: (bi, 0, qi, 0)),   # relative
        fixed(wq_h), fixed(bq_h), fixed(wo_h), fixed(bo),
        fixed(gamma), fixed(beta),
    ]

    return pl.pallas_call(
        kernel,
        out_shape=jax.ShapeDtypeStruct((b_s, nq, d_model), queries.dtype),
        grid=(b_s // bt, nq // tq),
        in_specs=in_specs,
        out_specs=pl.BlockSpec((bt, tq, d_model), lambda bi, qi: (bi, qi, 0)),
        compiler_params=pltpu.CompilerParams(
            # Every grid step is independent (K/V pre-projected, no carried
            # state), so both axes can shard across v7x's two TensorCores.
            dimension_semantics=("parallel", "parallel"),
            vmem_limit_bytes=_vmem_limit_bytes()),
    )(queries, kh, vh, rel, wq_h, bq_h, wo_h, bo, gamma, beta)


def init_params(key, d_model, d_k, d_v, h):
    """Deterministic xavier_uniform weights (stored as (in, out)), zero biases,
    LayerNorm gamma=1 / beta=0 — mirroring the module's init_weights()."""
    def xavier(key, fan_in, fan_out):
        a = math.sqrt(6.0 / (fan_in + fan_out))
        return jax.random.uniform(key, (fan_in, fan_out), jnp.float32, -a, a)

    k1, k2, k3, k4 = jax.random.split(key, 4)
    wq = xavier(k1, d_model, h * d_k)
    wk = xavier(k2, d_model, h * d_k)
    wv = xavier(k3, d_model, h * d_v)
    wo = xavier(k4, h * d_v, d_model)
    bq = jnp.zeros((1, h * d_k), jnp.float32)
    bk = jnp.zeros((1, h * d_k), jnp.float32)
    bv = jnp.zeros((1, h * d_v), jnp.float32)
    bo = jnp.zeros((1, d_model), jnp.float32)
    gamma = jnp.ones((1, d_model), jnp.float32)
    beta = jnp.zeros((1, d_model), jnp.float32)
    return (wq, bq, wk, bk, wv, bv, wo, bo, gamma, beta)


def reference(queries, keys, values, relative, params, *, h, d_k, d_v,
              ln_eps=1e-5, mxu_dtype=jnp.float32):
    """Pure-JAX reference. With mxu_dtype=float32 this is exactly the PyTorch
    module's math; with bfloat16 it mirrors the kernel's mixed precision
    (bf16 matmul operands / streamed `relative`, f32 accumulation)."""
    wq, bq, wk, bk, wv, bv, wo, bo, gamma, beta = params
    b_s, nq, d_model = queries.shape
    nk = keys.shape[1]
    f32 = jnp.float32
    c = lambda a: a.astype(mxu_dtype)

    def mm(a, b):
        return jnp.einsum('...ij,jk->...ik', c(a), c(b),
                          preferred_element_type=f32)

    q = (mm(queries, wq) + bq).reshape(b_s, nq, h, d_k).transpose(0, 2, 1, 3)
    k = (mm(keys, wk) + bk).reshape(b_s, nk, h, d_k).transpose(0, 2, 1, 3)
    v = (mm(values, wv) + bv).reshape(b_s, nk, h, d_v).transpose(0, 2, 1, 3)
    att = jnp.einsum('bhqd,bhkd->bhqk', c(q), c(k),
                     preferred_element_type=f32) / math.sqrt(d_k)
    att = att + c(relative).astype(f32)
    att = jax.nn.softmax(att, axis=-1)
    out = jnp.einsum('bhqk,bhkd->bhqd', c(att), c(v),
                     preferred_element_type=f32)
    out = out.transpose(0, 2, 1, 3).reshape(b_s, nq, h * d_v)
    out = mm(out, wo) + bo
    x = queries + out
    mean = jnp.mean(x, -1, keepdims=True)
    var = jnp.mean((x - mean) ** 2, -1, keepdims=True)
    return (x - mean) * lax.rsqrt(var + ln_eps) * gamma + beta


if __name__ == "__main__":
    d_model, d_k, d_v, h = 32, 8, 8, 4
    b_s, nq, nk = 2, 8, 8

    root = jax.random.PRNGKey(0)
    kq, kk, kv, kr, kp = jax.random.split(root, 5)
    queries = jax.random.normal(kq, (b_s, nq, d_model), jnp.float32)
    keys = jax.random.normal(kk, (b_s, nk, d_model), jnp.float32)
    values = jax.random.normal(kv, (b_s, nk, d_model), jnp.float32)
    relative = 0.1 * jax.random.normal(kr, (b_s, h, nq, nk), jnp.float32)
    params = init_params(kp, d_model, d_k, d_v, h)

    # 1) full-f32 configuration vs. exact module semantics (exact softmax).
    out_f32 = multi_head_attention_dis(queries, keys, values, relative, params,
                                       h=h, d_k=d_k, d_v=d_v,
                                       mxu_dtype=jnp.float32)
    out_f32 = jax.block_until_ready(out_f32)
    ref_f32 = reference(queries, keys, values, relative, params,
                        h=h, d_k=d_k, d_v=d_v, mxu_dtype=jnp.float32)
    assert out_f32.shape == (b_s, nq, d_model)
    err32 = float(jnp.max(jnp.abs(out_f32 - ref_f32)))
    assert jnp.allclose(out_f32, ref_f32, atol=1e-2, rtol=1e-2), err32

    # 2) performance configuration: bf16 MXU operands / streams, f32 accum.
    out_bf16 = multi_head_attention_dis(queries, keys, values, relative, params,
                                        h=h, d_k=d_k, d_v=d_v,
                                        mxu_dtype=jnp.bfloat16)
    out_bf16 = jax.block_until_ready(out_bf16)
    ref_bf16 = reference(queries, keys, values, relative, params,
                         h=h, d_k=d_k, d_v=d_v, mxu_dtype=jnp.bfloat16)
    err16 = float(jnp.max(jnp.abs(out_bf16 - ref_bf16)))
    assert jnp.allclose(out_bf16, ref_bf16, atol=3e-2, rtol=3e-2), err16

    print("KERNEL_OK")
</pallas_src>

<mosaic_0001>
module attributes {stable_mosaic.version = 11 : i64} {
  func.func @mha_dis_kernel(%arg0: i32, %arg1: i32, %arg2: memref<2x8x32xf32, #tpu.memory_space<vmem>>, %arg3: memref<2x4x8x8xf32, #tpu.memory_space<vmem>>, %arg4: memref<2x4x8x8xf32, #tpu.memory_space<vmem>>, %arg5: memref<2x4x8x8xf32, #tpu.memory_space<vmem>>, %arg6: memref<4x32x8xf32, #tpu.memory_space<vmem>>, %arg7: memref<4x1x8xf32, #tpu.memory_space<vmem>>, %arg8: memref<4x8x32xf32, #tpu.memory_space<vmem>>, %arg9: memref<1x32xf32, #tpu.memory_space<vmem>>, %arg10: memref<1x32xf32, #tpu.memory_space<vmem>>, %arg11: memref<1x32xf32, #tpu.memory_space<vmem>>, %arg12: memref<2x8x32xf32, #tpu.memory_space<vmem>>) attributes {dimension_semantics = [#tpu.dimension_semantics<parallel>, #tpu.dimension_semantics<parallel>], iteration_bounds = array<i64: 1, 1>, scalar_prefetch = 0 : i64, scratch_operands = 0 : i64, tpu.core_type = #tpu.core_type<tc>, window_params = [{transform_indices = @transform_0, window_bounds = array<i64: 2, 8, 32>}, {transform_indices = @transform_1, window_bounds = array<i64: 2, 4, 8, 8>}, {transform_indices = @transform_2, window_bounds = array<i64: 2, 4, 8, 8>}, {transform_indices = @transform_3, window_bounds = array<i64: 2, 4, 8, 8>}, {pipeline_mode = #tpu.pipeline_mode<synchronous>, transform_indices = @transform_4, window_bounds = array<i64: 4, 32, 8>}, {pipeline_mode = #tpu.pipeline_mode<synchronous>, transform_indices = @transform_5, window_bounds = array<i64: 4, 1, 8>}, {pipeline_mode = #tpu.pipeline_mode<synchronous>, transform_indices = @transform_6, window_bounds = array<i64: 4, 8, 32>}, {pipeline_mode = #tpu.pipeline_mode<synchronous>, transform_indices = @transform_7, window_bounds = array<i64: 1, 32>}, {pipeline_mode = #tpu.pipeline_mode<synchronous>, transform_indices = @transform_8, window_bounds = array<i64: 1, 32>}, {pipeline_mode = #tpu.pipeline_mode<synchronous>, transform_indices = @transform_9, window_bounds = array<i64: 1, 32>}, {transform_indices = @transform_10, window_bounds = array<i64: 2, 8, 32>}]} {
    %c0 = arith.constant 0 : index
    %c0_0 = arith.constant 0 : index
    %c0_1 = arith.constant 0 : index
    %0 = vector.load %arg2[%c0, %c0_0, %c0_1] : memref<2x8x32xf32, #tpu.memory_space<vmem>>, vector<2x8x32xf32>
    %1 = vector.shape_cast %0 : vector<2x8x32xf32> to vector<16x32xf32>
    %c0_2 = arith.constant 0 : index
    %c0_3 = arith.constant 0 : index
    %c0_4 = arith.constant 0 : index
    %2 = vector.load %arg6[%c0_2, %c0_3, %c0_4] : memref<4x32x8xf32, #tpu.memory_space<vmem>>, vector<1x32x8xf32>
    %3 = vector.shape_cast %2 : vector<1x32x8xf32> to vector<32x8xf32>
    %cst = arith.constant dense<0.000000e+00> : vector<16x8xf32>
    %4 = tpu.matmul %1, %3, %cst {dimension_numbers = #tpu.dot_dimension_numbers<[1], [0], [0], [1], [0, 0, 1, 1], [], []>} : vector<16x32xf32>, vector<32x8xf32>, vector<16x8xf32> -> vector<16x8xf32>
    %c0_5 = arith.constant 0 : index
    %c0_6 = arith.constant 0 : index
    %c0_7 = arith.constant 0 : index
    %5 = vector.load %arg7[%c0_5, %c0_6, %c0_7] : memref<4x1x8xf32, #tpu.memory_space<vmem>>, vector<1x1x8xf32>
    %6 = vector.shape_cast %5 : vector<1x1x8xf32> to vector<1x8xf32>
    %7 = vector.broadcast %6 : vector<1x8xf32> to vector<16x8xf32>
    %8 = arith.addf %4, %7 : vector<16x8xf32>
    %9 = vector.shape_cast %8 : vector<16x8xf32> to vector<2x8x8xf32>
    %c1 = arith.constant 1 : index
    %c0_8 = arith.constant 0 : index
    %c0_9 = arith.constant 0 : index
    %10 = vector.load %arg6[%c1, %c0_8, %c0_9] : memref<4x32x8xf32, #tpu.memory_space<vmem>>, vector<1x32x8xf32>
    %11 = vector.shape_cast %10 : vector<1x32x8xf32> to vector<32x8xf32>
    %cst_10 = arith.constant dense<0.000000e+00> : vector<16x8xf32>
    %12 = tpu.matmul %1, %11, %cst_10 {dimension_numbers = #tpu.dot_dimension_numbers<[1], [0], [0], [1], [0, 0, 1, 1], [], []>} : vector<16x32xf32>, vector<32x8xf32>, vector<16x8xf32> -> vector<16x8xf32>
    %c1_11 = arith.constant 1 : index
    %c0_12 = arith.constant 0 : index
    %c0_13 = arith.constant 0 : index
    %13 = vector.load %arg7[%c1_11, %c0_12, %c0_13] : memref<4x1x8xf32, #tpu.memory_space<vmem>>, vector<1x1x8xf32>
    %14 = vector.shape_cast %13 : vector<1x1x8xf32> to vector<1x8xf32>
    %15 = vector.broadcast %14 : vector<1x8xf32> to vector<16x8xf32>
    %16 = arith.addf %12, %15 : vector<16x8xf32>
    %17 = vector.shape_cast %16 : vector<16x8xf32> to vector<2x8x8xf32>
    %c2 = arith.constant 2 : index
    %c0_14 = arith.constant 0 : index
    %c0_15 = arith.constant 0 : index
    %18 = vector.load %arg6[%c2, %c0_14, %c0_15] : memref<4x32x8xf32, #tpu.memory_space<vmem>>, vector<1x32x8xf32>
    %19 = vector.shape_cast %18 : vector<1x32x8xf32> to vector<32x8xf32>
    %cst_16 = arith.constant dense<0.000000e+00> : vector<16x8xf32>
    %20 = tpu.matmul %1, %19, %cst_16 {dimension_numbers = #tpu.dot_dimension_numbers<[1], [0], [0], [1], [0, 0, 1, 1], [], []>} : vector<16x32xf32>, vector<32x8xf32>, vector<16x8xf32> -> vector<16x8xf32>
    %c2_17 = arith.constant 2 : index
    %c0_18 = arith.constant 0 : index
    %c0_19 = arith.constant 0 : index
    %21 = vector.load %arg7[%c2_17, %c0_18, %c0_19] : memref<4x1x8xf32, #tpu.memory_space<vmem>>, vector<1x1x8xf32>
    %22 = vector.shape_cast %21 : vector<1x1x8xf32> to vector<1x8xf32>
    %23 = vector.broadcast %22 : vector<1x8xf32> to vector<16x8xf32>
    %24 = arith.addf %20, %23 : vector<16x8xf32>
    %25 = vector.shape_cast %24 : vector<16x8xf32> to vector<2x8x8xf32>
    %c3 = arith.constant 3 : index
    %c0_20 = arith.constant 0 : index
    %c0_21 = arith.constant 0 : index
    %26 = vector.load %arg6[%c3, %c0_20, %c0_21] : memref<4x32x8xf32, #tpu.memory_space<vmem>>, vector<1x32x8xf32>
    %27 = vector.shape_cast %26 : vector<1x32x8xf32> to vector<32x8xf32>
    %cst_22 = arith.constant dense<0.000000e+00> : vector<16x8xf32>
    %28 = tpu.matmul %1, %27, %cst_22 {dimension_numbers = #tpu.dot_dimension_numbers<[1], [0], [0], [1], [0, 0, 1, 1], [], []>} : vector<16x32xf32>, vector<32x8xf32>, vector<16x8xf32> -> vector<16x8xf32>
    %c3_23 = arith.constant 3 : index
    %c0_24 = arith.constant 0 : index
    %c0_25 = arith.constant 0 : index
    %29 = vector.load %arg7[%c3_23, %c0_24, %c0_25] : memref<4x1x8xf32, #tpu.memory_space<vmem>>, vector<1x1x8xf32>
    %30 = vector.shape_cast %29 : vector<1x1x8xf32> to vector<1x8xf32>
    %31 = vector.broadcast %30 : vector<1x8xf32> to vector<16x8xf32>
    %32 = arith.addf %28, %31 : vector<16x8xf32>
    %33 = vector.shape_cast %32 : vector<16x8xf32> to vector<2x8x8xf32>
    %34 = vector.shape_cast %9 : vector<2x8x8xf32> to vector<2x1x8x8xf32>
    %35 = vector.shape_cast %17 : vector<2x8x8xf32> to vector<2x1x8x8xf32>
    %36 = vector.shape_cast %25 : vector<2x8x8xf32> to vector<2x1x8x8xf32>
    %37 = vector.shape_cast %33 : vector<2x8x8xf32> to vector<2x1x8x8xf32>
    %38 = tpu.concatenate %34, %35, %36, %37 in 1 : vector<2x1x8x8xf32>, vector<2x1x8x8xf32>, vector<2x1x8x8xf32>, vector<2x1x8x8xf32> -> vector<2x4x8x8xf32>
    %39 = vector.shape_cast %38 : vector<2x4x8x8xf32> to vector<8x8x8xf32>
    %c0_26 = arith.constant 0 : index
    %c0_27 = arith.constant 0 : index
    %c0_28 = arith.constant 0 : index
    %c0_29 = arith.constant 0 : index
    %40 = vector.load %arg3[%c0_26, %c0_27, %c0_28, %c0_29] : memref<2x4x8x8xf32, #tpu.memory_space<vmem>>, vector<2x4x8x8xf32>
    %41 = vector.shape_cast %40 : vector<2x4x8x8xf32> to vector<8x8x8xf32>
    %c0_30 = arith.constant 0 : index
    %c0_31 = arith.constant 0 : index
    %c0_32 = arith.constant 0 : index
    %c0_33 = arith.constant 0 : index
    %42 = vector.load %arg4[%c0_30, %c0_31, %c0_32, %c0_33] : memref<2x4x8x8xf32, #tpu.memory_space<vmem>>, vector<2x4x8x8xf32>
    %43 = vector.shape_cast %42 : vector<2x4x8x8xf32> to vector<8x8x8xf32>
    "tpu.trace_start"() <{level = 10 : i32, message = "bqd,bkd->bqk"}> : () -> ()
    %cst_34 = arith.constant dense<0.000000e+00> : vector<8x8x8xf32>
    %44 = tpu.matmul %39, %41, %cst_34 {dimension_numbers = #tpu.dot_dimension_numbers<[2], [2], [1], [1], [0, 0, 0, 1, 1, 1], [0], [0]>} : vector<8x8x8xf32>, vector<8x8x8xf32>, vector<8x8x8xf32> -> vector<8x8x8xf32>
    "tpu.trace_stop"() : () -> ()
    %c0_35 = arith.constant 0 : index
    %c0_36 = arith.constant 0 : index
    %c0_37 = arith.constant 0 : index
    %c0_38 = arith.constant 0 : index
    %45 = vector.load %arg5[%c0_35, %c0_36, %c0_37, %c0_38] : memref<2x4x8x8xf32, #tpu.memory_space<vmem>>, vector<2x4x8x8xf32>
    %46 = vector.shape_cast %45 : vector<2x4x8x8xf32> to vector<8x8x8xf32>
    %47 = arith.addf %44, %46 : vector<8x8x8xf32>
    %cst_39 = arith.constant dense<0xFF800000> : vector<8x8xf32>
    %48 = vector.multi_reduction <maximumf>, %47, %cst_39 [2] : vector<8x8x8xf32> to vector<8x8xf32>
    %49 = vector.shape_cast %48 : vector<8x8xf32> to vector<8x8x1xf32>
    %50 = vector.broadcast %49 : vector<8x8x1xf32> to vector<8x8x8xf32>
    %51 = arith.subf %47, %50 : vector<8x8x8xf32>
    %52 = math.exp %51 : vector<8x8x8xf32>
    %cst_40 = arith.constant dense<0.000000e+00> : vector<8x8xf32>
    %53 = vector.multi_reduction <add>, %52, %cst_40 [2] : vector<8x8x8xf32> to vector<8x8xf32>
    %54 = vector.shape_cast %53 : vector<8x8xf32> to vector<8x8x1xf32>
    %55 = vector.broadcast %54 : vector<8x8x1xf32> to vector<8x8x8xf32>
    %56 = arith.divf %52, %55 : vector<8x8x8xf32>
    "tpu.trace_start"() <{level = 10 : i32, message = "bqk,bkv->bqv"}> : () -> ()
    %cst_41 = arith.constant dense<0.000000e+00> : vector<8x8x8xf32>
    %57 = tpu.matmul %56, %43, %cst_41 {dimension_numbers = #tpu.dot_dimension_numbers<[2], [1], [1], [2], [0, 0, 0, 1, 1, 2], [0], [0]>} : vector<8x8x8xf32>, vector<8x8x8xf32>, vector<8x8x8xf32> -> vector<8x8x8xf32>
    "tpu.trace_stop"() : () -> ()
    %58 = vector.shape_cast %57 : vector<8x8x8xf32> to vector<2x4x8x8xf32>
    %cst_42 = arith.constant 0.000000e+00 : f32
    %59 = vector.broadcast %cst_42 : f32 to vector<16x32xf32>
    %60 = vector.extract_strided_slice %58 {offsets = [0, 0, 0, 0], sizes = [2, 1, 8, 8], strides = [1, 1, 1, 1]} : vector<2x4x8x8xf32> to vector<2x1x8x8xf32>
    %61 = vector.shape_cast %60 : vector<2x1x8x8xf32> to vector<2x8x8xf32>
    %62 = vector.shape_cast %61 : vector<2x8x8xf32> to vector<16x8xf32>
    %c0_43 = arith.constant 0 : index
    %c0_44 = arith.constant 0 : index
    %c0_45 = arith.constant 0 : index
    %63 = vector.load %arg8[%c0_43, %c0_44, %c0_45] : memref<4x8x32xf32, #tpu.memory_space<vmem>>, vector<1x8x32xf32>
    %64 = vector.shape_cast %63 : vector<1x8x32xf32> to vector<8x32xf32>
    %cst_46 = arith.constant dense<0.000000e+00> : vector<16x32xf32>
    %65 = tpu.matmul %62, %64, %cst_46 {dimension_numbers = #tpu.dot_dimension_numbers<[1], [0], [0], [1], [0, 0, 1, 1], [], []>} : vector<16x8xf32>, vector<8x32xf32>, vector<16x32xf32> -> vector<16x32xf32>
    %66 = arith.addf %59, %65 : vector<16x32xf32>
    %67 = vector.extract_strided_slice %58 {offsets = [0, 1, 0, 0], sizes = [2, 1, 8, 8], strides = [1, 1, 1, 1]} : vector<2x4x8x8xf32> to vector<2x1x8x8xf32>
    %68 = vector.shape_cast %67 : vector<2x1x8x8xf32> to vector<2x8x8xf32>
    %69 = vector.shape_cast %68 : vector<2x8x8xf32> to vector<16x8xf32>
    %c1_47 = arith.constant 1 : index
    %c0_48 = arith.constant 0 : index
    %c0_49 = arith.constant 0 : index
    %70 = vector.load %arg8[%c1_47, %c0_48, %c0_49] : memref<4x8x32xf32, #tpu.memory_space<vmem>>, vector<1x8x32xf32>
    %71 = vector.shape_cast %70 : vector<1x8x32xf32> to vector<8x32xf32>
    %cst_50 = arith.constant dense<0.000000e+00> : vector<16x32xf32>
    %72 = tpu.matmul %69, %71, %cst_50 {dimension_numbers = #tpu.dot_dimension_numbers<[1], [0], [0], [1], [0, 0, 1, 1], [], []>} : vector<16x8xf32>, vector<8x32xf32>, vector<16x32xf32> -> vector<16x32xf32>
    %73 = arith.addf %66, %72 : vector<16x32xf32>
    %74 = vector.extract_strided_slice %58 {offsets = [0, 2, 0, 0], sizes = [2, 1, 8, 8], strides = [1, 1, 1, 1]} : vector<2x4x8x8xf32> to vector<2x1x8x8xf32>
    %75 = vector.shape_cast %74 : vector<2x1x8x8xf32> to vector<2x8x8xf32>
    %76 = vector.shape_cast %75 : vector<2x8x8xf32> to vector<16x8xf32>
    %c2_51 = arith.constant 2 : index
    %c0_52 = arith.constant 0 : index
    %c0_53 = arith.constant 0 : index
    %77 = vector.load %arg8[%c2_51, %c0_52, %c0_53] : memref<4x8x32xf32, #tpu.memory_space<vmem>>, vector<1x8x32xf32>
    %78 = vector.shape_cast %77 : vector<1x8x32xf32> to vector<8x32xf32>
    %cst_54 = arith.constant dense<0.000000e+00> : vector<16x32xf32>
    %79 = tpu.matmul %76, %78, %cst_54 {dimension_numbers = #tpu.dot_dimension_numbers<[1], [0], [0], [1], [0, 0, 1, 1], [], []>} : vector<16x8xf32>, vector<8x32xf32>, vector<16x32xf32> -> vector<16x32xf32>
    %80 = arith.addf %73, %79 : vector<16x32xf32>
    %81 = vector.extract_strided_slice %58 {offsets = [0, 3, 0, 0], sizes = [2, 1, 8, 8], strides = [1, 1, 1, 1]} : vector<2x4x8x8xf32> to vector<2x1x8x8xf32>
    %82 = vector.shape_cast %81 : vector<2x1x8x8xf32> to vector<2x8x8xf32>
    %83 = vector.shape_cast %82 : vector<2x8x8xf32> to vector<16x8xf32>
    %c3_55 = arith.constant 3 : index
    %c0_56 = arith.constant 0 : index
    %c0_57 = arith.constant 0 : index
    %84 = vector.load %arg8[%c3_55, %c0_56, %c0_57] : memref<4x8x32xf32, #tpu.memory_space<vmem>>, vector<1x8x32xf32>
    %85 = vector.shape_cast %84 : vector<1x8x32xf32> to vector<8x32xf32>
    %cst_58 = arith.constant dense<0.000000e+00> : vector<16x32xf32>
    %86 = tpu.matmul %83, %85, %cst_58 {dimension_numbers = #tpu.dot_dimension_numbers<[1], [0], [0], [1], [0, 0, 1, 1], [], []>} : vector<16x8xf32>, vector<8x32xf32>, vector<16x32xf32> -> vector<16x32xf32>
    %87 = arith.addf %80, %86 : vector<16x32xf32>
    %c0_59 = arith.constant 0 : index
    %c0_60 = arith.constant 0 : index
    %88 = vector.load %arg9[%c0_59, %c0_60] : memref<1x32xf32, #tpu.memory_space<vmem>>, vector<1x32xf32>
    %89 = vector.broadcast %88 : vector<1x32xf32> to vector<16x32xf32>
    %90 = arith.addf %87, %89 : vector<16x32xf32>
    %91 = arith.addf %1, %90 : vector<16x32xf32>
    %cst_61 = arith.constant dense<0.000000e+00> : vector<16xf32>
    %92 = vector.multi_reduction <add>, %91, %cst_61 [1] : vector<16x32xf32> to vector<16xf32>
    %93 = vector.shape_cast %92 : vector<16xf32> to vector<16x1xf32>
    %cst_62 = arith.constant 3.200000e+01 : f32
    %94 = vector.broadcast %cst_62 : f32 to vector<16x1xf32>
    %95 = arith.divf %93, %94 : vector<16x1xf32>
    %96 = vector.broadcast %95 : vector<16x1xf32> to vector<16x32xf32>
    %97 = arith.subf %91, %96 : vector<16x32xf32>
    %98 = arith.mulf %97, %97 : vector<16x32xf32>
    %cst_63 = arith.constant dense<0.000000e+00> : vector<16xf32>
    %99 = vector.multi_reduction <add>, %98, %cst_63 [1] : vector<16x32xf32> to vector<16xf32>
    %100 = vector.shape_cast %99 : vector<16xf32> to vector<16x1xf32>
    %cst_64 = arith.constant 3.200000e+01 : f32
    %101 = vector.broadcast %cst_64 : f32 to vector<16x1xf32>
    %102 = arith.divf %100, %101 : vector<16x1xf32>
    %103 = vector.broadcast %95 : vector<16x1xf32> to vector<16x32xf32>
    %104 = arith.subf %91, %103 : vector<16x32xf32>
    %cst_65 = arith.constant 9.99999974E-6 : f32
    %105 = vector.broadcast %cst_65 : f32 to vector<16x1xf32>
    %106 = arith.addf %102, %105 : vector<16x1xf32>
    %107 = math.rsqrt %106 : vector<16x1xf32>
    %108 = vector.broadcast %107 : vector<16x1xf32> to vector<16x32xf32>
    %109 = arith.mulf %104, %108 : vector<16x32xf32>
    %c0_66 = arith.constant 0 : index
    %c0_67 = arith.constant 0 : index
    %110 = vector.load %arg10[%c0_66, %c0_67] : memref<1x32xf32, #tpu.memory_space<vmem>>, vector<1x32xf32>
    %111 = vector.broadcast %110 : vector<1x32xf32> to vector<16x32xf32>
    %112 = arith.mulf %109, %111 : vector<16x32xf32>
    %c0_68 = arith.constant 0 : index
    %c0_69 = arith.constant 0 : index
    %113 = vector.load %arg11[%c0_68, %c0_69] : memref<1x32xf32, #tpu.memory_space<vmem>>, vector<1x32xf32>
    %114 = vector.broadcast %113 : vector<1x32xf32> to vector<16x32xf32>
    %115 = arith.addf %112, %114 : vector<16x32xf32>
    %116 = vector.shape_cast %115 : vector<16x32xf32> to vector<2x8x32xf32>
    %c0_70 = arith.constant 0 : index
    %c0_71 = arith.constant 0 : index
    %c0_72 = arith.constant 0 : index
    %117 = vector.load %arg12[%c0_70, %c0_71, %c0_72] : memref<2x8x32xf32, #tpu.memory_space<vmem>>, vector<2x8x32xf32>
    tpu.vector_store %arg12[%c0_70, %c0_71, %c0_72], %116 {strides = array<i32>} : memref<2x8x32xf32, #tpu.memory_space<vmem>>, vector<2x8x32xf32>,
    return
  }
  func.func @transform_0(%arg0: i32, %arg1: i32) -> (i32, i32, i32) {
    %c0_i32 = arith.constant 0 : i32
    %c0_i32_0 = arith.constant 0 : i32
    return %arg0, %arg1, %c0_i32 : i32, i32, i32
  }
  func.func @transform_1(%arg0: i32, %arg1: i32) -> (i32, i32, i32, i32) {
    %c0_i32 = arith.constant 0 : i32
    %c0_i32_0 = arith.constant 0 : i32
    %c0_i32_1 = arith.constant 0 : i32
    %c0_i32_2 = arith.constant 0 : i32
    return %arg0, %c0_i32, %c0_i32_0, %c0_i32_1 : i32, i32, i32, i32
  }
  func.func @transform_2(%arg0: i32, %arg1: i32) -> (i32, i32, i32, i32) {
    %c0_i32 = arith.constant 0 : i32
    %c0_i32_0 = arith.constant 0 : i32
    %c0_i32_1 = arith.constant 0 : i32
    %c0_i32_2 = arith.constant 0 : i32
    return %arg0, %c0_i32, %c0_i32_0, %c0_i32_1 : i32, i32, i32, i32
  }
  func.func @transform_3(%arg0: i32, %arg1: i32) -> (i32, i32, i32, i32) {
    %c0_i32 = arith.constant 0 : i32
    %c0_i32_0 = arith.constant 0 : i32
    %c0_i32_1 = arith.constant 0 : i32
    return %arg0, %c0_i32, %arg1, %c0_i32_0 : i32, i32, i32, i32
  }
  func.func @transform_4(%arg0: i32, %arg1: i32) -> (i32, i32, i32) {
    %c0_i32 = arith.constant 0 : i32
    %c0_i32_0 = arith.constant 0 : i32
    %c0_i32_1 = arith.constant 0 : i32
    %c0_i32_2 = arith.constant 0 : i32
    return %c0_i32, %c0_i32_0, %c0_i32_1 : i32, i32, i32
  }
  func.func @transform_5(%arg0: i32, %arg1: i32) -> (i32, i32, i32) {
    %c0_i32 = arith.constant 0 : i32
    %c0_i32_0 = arith.constant 0 : i32
    %c0_i32_1 = arith.constant 0 : i32
    %c0_i32_2 = arith.constant 0 : i32
    return %c0_i32, %c0_i32_0, %c0_i32_1 : i32, i32, i32
  }
  func.func @transform_6(%arg0: i32, %arg1: i32) -> (i32, i32, i32) {
    %c0_i32 = arith.constant 0 : i32
    %c0_i32_0 = arith.constant 0 : i32
    %c0_i32_1 = arith.constant 0 : i32
    %c0_i32_2 = arith.constant 0 : i32
    return %c0_i32, %c0_i32_0, %c0_i32_1 : i32, i32, i32
  }
  func.func @transform_7(%arg0: i32, %arg1: i32) -> (i32, i32) {
    %c0_i32 = arith.constant 0 : i32
    %c0_i32_0 = arith.constant 0 : i32
    %c0_i32_1 = arith.constant 0 : i32
    return %c0_i32, %c0_i32_0 : i32, i32
  }
  func.func @transform_8(%arg0: i32, %arg1: i32) -> (i32, i32) {
    %c0_i32 = arith.constant 0 : i32
    %c0_i32_0 = arith.constant 0 : i32
    %c0_i32_1 = arith.constant 0 : i32
    return %c0_i32, %c0_i32_0 : i32, i32
  }
  func.func @transform_9(%arg0: i32, %arg1: i32) -> (i32, i32) {
    %c0_i32 = arith.constant 0 : i32
    %c0_i32_0 = arith.constant 0 : i32
    %c0_i32_1 = arith.constant 0 : i32
    return %c0_i32, %c0_i32_0 : i32, i32
  }
  func.func @transform_10(%arg0: i32, %arg1: i32) -> (i32, i32, i32) {
    %c0_i32 = arith.constant 0 : i32
    %c0_i32_0 = arith.constant 0 : i32
    return %arg0, %arg1, %c0_i32 : i32, i32, i32
  }
}

</mosaic_0001>

<llo_original>
// kernel: tpu_custom_call.1
$region0: #{tpu_custom_call.1}
  #allocation0 [shape = 'u32[]', space=smem, size = 0x4, offset = 0x4, fixed_abs, tag = 'smem constant byte address 0x4 - core index']
  #allocation1 [shape = 'u32[144,128]{1,0:T(1,128)}', space=vmem, size = 0x12000, scoped, tag = 'internal scratch']
  %s0 = inlined_call_operand.hbm [shape: f32[2,8,32], index: 0, kind: input, shape index: {}]
  %s1 = inlined_call_operand.hbm [shape: f32[2,4,8,8], index: 1, kind: input, shape index: {}]
  %s2 = inlined_call_operand.hbm [shape: f32[2,4,8,8], index: 2, kind: input, shape index: {}]
  %s3 = inlined_call_operand.hbm [shape: f32[2,4,8,8], index: 3, kind: input, shape index: {}]
  %s4 = inlined_call_operand.hbm [shape: f32[4,32,8], index: 4, kind: input, shape index: {}]
  %s5 = inlined_call_operand.hbm [shape: f32[4,1,8], index: 5, kind: input, shape index: {}]
  %s6 = inlined_call_operand.hbm [shape: f32[4,8,32], index: 6, kind: input, shape index: {}]
  %s7 = inlined_call_operand.hbm [shape: f32[1,32], index: 7, kind: input, shape index: {}]
  %s8 = inlined_call_operand.hbm [shape: f32[1,32], index: 8, kind: input, shape index: {}]
  %s9 = inlined_call_operand.hbm [shape: f32[1,32], index: 9, kind: input, shape index: {}]
  %s10 = inlined_call_operand.hbm [shape: f32[2,8,32], index: 10, kind: output, shape index: {}]
  %s11 = sld [smem:[#allocation0]]
  $region90: #{tpu_custom_call.1} parent=0
    _
  %s13 = ssub.s32 1, %s11
  %s14 = scalar_select 0, %s13, %s11
  $region1: #{tpu_custom_call.1} parent=0
    #allocation2 [shape = 'u8[8192]{0}', space=vmem, size = 0x2000, scoped, tag = 'input window, operand 0, single buffered']
    #allocation3 [shape = 's32[1]{0}', space=sflag, size = 0x4, scoped, tag = 'scoped memory for tpu_custom_call.1']
    #allocation4 [shape = 's32[1]{0}', space=sflag, size = 0x4, scoped, tag = 'scoped memory for tpu_custom_call.1']
    #allocation5 [shape = 'u8[32768]{0}', space=vmem, size = 0x8000, scoped, tag = 'input window, operand 1, single buffered']
    #allocation6 [shape = 's32[1]{0}', space=sflag, size = 0x4, scoped, tag = 'scoped memory for tpu_custom_call.1']
    #allocation7 [shape = 'u8[32768]{0}', space=vmem, size = 0x8000, scoped, tag = 'input window, operand 2, single buffered']
    #allocation8 [shape = 'u8[32768]{0}', space=vmem, size = 0x8000, scoped, tag = 'input window, operand 3, single buffered']
    #allocation9 [shape = 's32[1]{0}', space=sflag, size = 0x4, scoped, tag = 'scoped memory for tpu_custom_call.1']
    #allocation10 [shape = 'u8[65536]{0}', space=vmem, size = 0x10000, scoped, tag = 'input window, operand 4, single buffered']
    #allocation11 [shape = 'u8[2048]{0}', space=vmem, size = 0x800, scoped, tag = 'input window, operand 5, single buffered']
    #allocation12 [shape = 's32[1]{0}', space=sflag, size = 0x4, scoped, tag = 'scoped memory for tpu_custom_call.1']
    #allocation13 [shape = 'u8[16384]{0}', space=vmem, size = 0x4000, scoped, tag = 'input window, operand 6, single buffered']
    #allocation14 [shape = 'u8[512]{0}', space=vmem, size = 0x400, scoped, tag = 'input window, operand 7, single buffered']
    #allocation15 [shape = 's32[1]{0}', space=sflag, size = 0x4, scoped, tag = 'scoped memory for tpu_custom_call.1']
    #allocation16 [shape = 'u8[512]{0}', space=vmem, size = 0x400, scoped, tag = 'input window, operand 8, single buffered']
    #allocation17 [shape = 'u8[512]{0}', space=vmem, size = 0x400, scoped, tag = 'input window, operand 9, single buffered']
    #allocation18 [shape = 's32[1]{0}', space=sflag, size = 0x4, scoped, tag = 'scoped memory for tpu_custom_call.1']
    #allocation19 [shape = 'u8[8192]{0}', space=vmem, size = 0x2000, scoped, tag = 'output window, operand 0, single buffered']
    %15 = vsyncpa [#allocation3], 0
    %16 = vsyncpa [#allocation6], 0
    %17 = vsyncpa [#allocation9], 0
    %18 = vsyncpa [#allocation12], 0
    %19 = vsyncpa [#allocation15], 0
    %20 = vsyncpa [#allocation18], 0
    %21 = vsyncpa [#allocation4], 0
    // Predicated region
    $region2: #{tpu_custom_call.1} parent=1 // pred_check
      _
    $region3: #{tpu_custom_call.1} parent=1 // pred_check_branch
      %23 = sbr.rel (0) target = $region5
    $region4: #{tpu_custom_call.1} parent=1 // pred_region
      %s25 = ssub.s32 256, 256
      %26 = vsyncadd [#allocation3], %s25
      %s27 = sshll.u32 [#allocation2], 4
      %s28 = int_to_ptr.vmem [resolvable:$true] %s27
      %33 = dma.hbm_to_vmem [thread:$0]  %s0, 256, %s28, [#allocation3], 128, 128, 8
    $region5: #{tpu_custom_call.1} parent=1 // pred_fallthru
      _
    // Predicated region
    $region6: #{tpu_custom_call.1} parent=1 // pred_check
      _
    $region7: #{tpu_custom_call.1} parent=1 // pred_check_branch
      %35 = sbr.rel (0) target = $region9
    $region8: #{tpu_custom_call.1} parent=1 // pred_region
      %s37 = ssub.s32 1024, 1024
      %38 = vsyncadd [#allocation6], %s37
      %s39 = sshll.u32 [#allocation5], 4
      %s40 = int_to_ptr.vmem [resolvable:$true] %s39
      %45 = dma.hbm_to_vmem [thread:$0]  %s1, 1024, %s40, [#allocation6], 128, 128, 8
    $region9: #{tpu_custom_call.1} parent=1 // pred_fallthru
      _
    // Predicated region
    $region10: #{tpu_custom_call.1} parent=1 // pred_check
      _
    $region11: #{tpu_custom_call.1} parent=1 // pred_check_branch
      %47 = sbr.rel (0) target = $region13
    $region12: #{tpu_custom_call.1} parent=1 // pred_region
      %s49 = ssub.s32 1024, 1024
      %50 = vsyncadd [#allocation6], %s49
      %s51 = sshll.u32 [#allocation7], 4
      %s52 = int_to_ptr.vmem [resolvable:$true] %s51
      %57 = dma.hbm_to_vmem [thread:$0]  %s2, 1024, %s52, [#allocation6], 128, 128, 8
    $region13: #{tpu_custom_call.1} parent=1 // pred_fallthru
      _
    // Predicated region
    $region14: #{tpu_custom_call.1} parent=1 // pred_check
      _
    $region15: #{tpu_custom_call.1} parent=1 // pred_check_branch
      %59 = sbr.rel (0) target = $region17
    $region16: #{tpu_custom_call.1} parent=1 // pred_region
      %s61 = ssub.s32 1024, 1024
      %62 = vsyncadd [#allocation9], %s61
      %s63 = sshll.u32 [#allocation8], 4
      %s64 = int_to_ptr.vmem [resolvable:$true] %s63
      %69 = dma.hbm_to_vmem [thread:$0]  %s3, 1024, %s64, [#allocation9], 128, 128, 8
    $region17: #{tpu_custom_call.1} parent=1 // pred_fallthru
      _
    // Predicated region
    $region18: #{tpu_custom_call.1} parent=1 // pred_check
      _
    $region19: #{tpu_custom_call.1} parent=1 // pred_check_branch
      %71 = sbr.rel (0) target = $region21
    $region20: #{tpu_custom_call.1} parent=1 // pred_region
      %s73 = ssub.s32 2048, 2048
      %74 = vsyncadd [#allocation9], %s73
      %s75 = sshll.u32 [#allocation10], 4
      %s76 = int_to_ptr.vmem [resolvable:$true] %s75
      %81 = dma.hbm_to_vmem [thread:$0]  %s4, 2048, %s76, [#allocation9], 128, 128, 8
    $region21: #{tpu_custom_call.1} parent=1 // pred_fallthru
      _
    // Predicated region
    $region22: #{tpu_custom_call.1} parent=1 // pred_check
      _
    $region23: #{tpu_custom_call.1} parent=1 // pred_check_branch
      %83 = sbr.rel (0) target = $region25
    $region24: #{tpu_custom_call.1} parent=1 // pred_region
      %s85 = ssub.s32 64, 64
      %86 = vsyncadd [#allocation12], %s85
      %s87 = sshll.u32 [#allocation11], 4
      %s88 = int_to_ptr.vmem [resolvable:$true] %s87
      %93 = dma.hbm_to_vmem [thread:$0]  %s5, 64, %s88, [#allocation12], 16, 16, 1
    $region25: #{tpu_custom_call.1} parent=1 // pred_fallthru
      _
    // Predicated region
    $region26: #{tpu_custom_call.1} parent=1 // pred_check
      _
    $region27: #{tpu_custom_call.1} parent=1 // pred_check_branch
      %95 = sbr.rel (0) target = $region29
    $region28: #{tpu_custom_call.1} parent=1 // pred_region
      %s97 = ssub.s32 512, 512
      %98 = vsyncadd [#allocation12], %s97
      %s99 = sshll.u32 [#allocation13], 4
      %s100 = int_to_ptr.vmem [resolvable:$true] %s99
      %105 = dma.hbm_to_vmem [thread:$0]  %s6, 512, %s100, [#allocation12], 128, 128, 8
    $region29: #{tpu_custom_call.1} parent=1 // pred_fallthru
      _
    // Predicated region
    $region30: #{tpu_custom_call.1} parent=1 // pred_check
      _
    $region31: #{tpu_custom_call.1} parent=1 // pred_check_branch
      %107 = sbr.rel (0) target = $region33
    $region32: #{tpu_custom_call.1} parent=1 // pred_region
      %s109 = ssub.s32 16, 16
      %110 = vsyncadd [#allocation15], %s109
      %s112 = sshll.u32 [#allocation14], 4
      %s113 = int_to_ptr.vmem [resolvable:$true] %s112
      %115 = dma.hbm_to_vmem [thread:$0]  %s7, 16, %s113, [#allocation15]
    $region33: #{tpu_custom_call.1} parent=1 // pred_fallthru
      _
    // Predicated region
    $region34: #{tpu_custom_call.1} parent=1 // pred_check
      _
    $region35: #{tpu_custom_call.1} parent=1 // pred_check_branch
      %117 = sbr.rel (0) target = $region37
    $region36: #{tpu_custom_call.1} parent=1 // pred_region
      %s119 = ssub.s32 16, 16
      %120 = vsyncadd [#allocation15], %s119
      %s122 = sshll.u32 [#allocation16], 4
      %s123 = int_to_ptr.vmem [resolvable:$true] %s122
      %125 = dma.hbm_to_vmem [thread:$0]  %s8, 16, %s123, [#allocation15]
    $region37: #{tpu_custom_call.1} parent=1 // pred_fallthru
      _
    // Predicated region
    $region38: #{tpu_custom_call.1} parent=1 // pred_check
      _
    $region39: #{tpu_custom_call.1} parent=1 // pred_check_branch
      %127 = sbr.rel (0) target = $region41
    $region40: #{tpu_custom_call.1} parent=1 // pred_region
      %s129 = ssub.s32 16, 16
      %130 = vsyncadd [#allocation18], %s129
      %s132 = sshll.u32 [#allocation17], 4
      %s133 = int_to_ptr.vmem [resolvable:$true] %s132
      %135 = dma.hbm_to_vmem [thread:$0]  %s9, 16, %s133, [#allocation18]
    $region41: #{tpu_custom_call.1} parent=1 // pred_fallthru
      _
    // Predicated region
    $region42: #{tpu_custom_call.1} parent=1 // pred_check
      _
    $region43: #{tpu_custom_call.1} parent=1 // pred_check_branch
      %137 = sbr.rel (0) target = $region45
    $region44: #{tpu_custom_call.1} parent=1 // pred_region
      %138 = dma.done [#allocation3], 256
    $region45: #{tpu_custom_call.1} parent=1 // pred_fallthru
      _
    // Predicated region
    $region46: #{tpu_custom_call.1} parent=1 // pred_check
      _
    $region47: #{tpu_custom_call.1} parent=1 // pred_check_branch
      %140 = sbr.rel (0) target = $region49
    $region48: #{tpu_custom_call.1} parent=1 // pred_region
      %141 = dma.done [#allocation6], 1024
    $region49: #{tpu_custom_call.1} parent=1 // pred_fallthru
      _
    // Predicated region
    $region50: #{tpu_custom_call.1} parent=1 // pred_check
      _
    $region51: #{tpu_custom_call.1} parent=1 // pred_check_branch
      %143 = sbr.rel (0) target = $region53
    $region52: #{tpu_custom_call.1} parent=1 // pred_region
      %144 = dma.done [#allocation6], 1024
    $region53: #{tpu_custom_call.1} parent=1 // pred_fallthru
      _
    // Predicated region
    $region54: #{tpu_custom_call.1} parent=1 // pred_check
      _
    $region55: #{tpu_custom_call.1} parent=1 // pred_check_branch
      %146 = sbr.rel (0) target = $region57
    $region56: #{tpu_custom_call.1} parent=1 // pred_region
      %147 = dma.done [#allocation9], 1024
    $region57: #{tpu_custom_call.1} parent=1 // pred_fallthru
      _
    // Predicated region
    $region58: #{tpu_custom_call.1} parent=1 // pred_check
      _
    $region59: #{tpu_custom_call.1} parent=1 // pred_check_branch
      %149 = sbr.rel (0) target = $region61
    $region60: #{tpu_custom_call.1} parent=1 // pred_region
      %150 = dma.done [#allocation9], 2048
    $region61: #{tpu_custom_call.1} parent=1 // pred_fallthru
      _
    // Predicated region
    $region62: #{tpu_custom_call.1} parent=1 // pred_check
      _
    $region63: #{tpu_custom_call.1} parent=1 // pred_check_branch
      %152 = sbr.rel (0) target = $region65
    $region64: #{tpu_custom_call.1} parent=1 // pred_region
      %153 = dma.done [#allocation12], 64
    $region65: #{tpu_custom_call.1} parent=1 // pred_fallthru
      _
    // Predicated region
    $region66: #{tpu_custom_call.1} parent=1 // pred_check
      _
    $region67: #{tpu_custom_call.1} parent=1 // pred_check_branch
      %155 = sbr.rel (0) target = $region69
    $region68: #{tpu_custom_call.1} parent=1 // pred_region
      %156 = dma.done [#allocation12], 512
    $region69: #{tpu_custom_call.1} parent=1 // pred_fallthru
      _
    // Predicated region
    $region70: #{tpu_custom_call.1} parent=1 // pred_check
      _
    $region71: #{tpu_custom_call.1} parent=1 // pred_check_branch
      %158 = sbr.rel (0) target = $region73
    $region72: #{tpu_custom_call.1} parent=1 // pred_region
      %159 = dma.done [#allocation15], 16
    $region73: #{tpu_custom_call.1} parent=1 // pred_fallthru
      _
    // Predicated region
    $region74: #{tpu_custom_call.1} parent=1 // pred_check
      _
    $region75: #{tpu_custom_call.1} parent=1 // pred_check_branch
      %161 = sbr.rel (0) target = $region77
    $region76: #{tpu_custom_call.1} parent=1 // pred_region
      %162 = dma.done [#allocation15], 16
    $region77: #{tpu_custom_call.1} parent=1 // pred_fallthru
      _
    // Predicated region
    $region78: #{tpu_custom_call.1} parent=1 // pred_check
      _
    $region79: #{tpu_custom_call.1} parent=1 // pred_check_branch
      %164 = sbr.rel (0) target = $region81
    $region80: #{tpu_custom_call.1} parent=1 // pred_region
      %165 = dma.done [#allocation18], 16
    $region81: #{tpu_custom_call.1} parent=1 // pred_fallthru
      _
    %v166 = vld [vmem:[#allocation2] sm:$0xff]
    %v167 = vld [vmem:[#allocation2 + $0x8] sm:$0xff]
    %v168 = vld [vmem:[#allocation10] sm:$0xff]
    %v169 = vld [vmem:[#allocation10 + $0x8] sm:$0xff]
    %v170 = vld [vmem:[#allocation10 + $0x10] sm:$0xff]
    %v171 = vld [vmem:[#allocation10 + $0x18] sm:$0xff]
    %v172 = vld [vmem:[#allocation11] sm:$0x1]
    %v174 = vlaneseq
    %v175 = vshrl.u32 %v174, 7
    %v176 = vsub.s32 0, %v175
    %v177 = vrot.slane %v172, %v176
    %vm179 = vcmask 261120
    %v181 = vsel %vm179, %v166, 0
    %v184 = vsel %vm179, %v167, 0
    %186 = vmatprep.subr.mxu0 0.0
    %187 = vmatpush1.msra.mxu0 %v168
    %188 = vmatprep.subr.mxu0 0.0
    %189 = vmatpush1.msra.mxu0 %v169
    %190 = vmatprep.subr.mxu0 0.0
    %191 = vmatpush1.msra.mxu0 %v170
    %192 = vmatprep.subr.mxu0 0.0
    %193 = vmatpush1.msra.mxu0 %v171
    %194 = vmatprep.subr.mxu0 0.0
    %195 = vmatpush1.msra.mxu0 0.0
    %196 = vmatprep.subr.mxu0 0.0
    %197 = vmatpush1.msra.mxu0 0.0
    %198 = vmatprep.subr.mxu0 0.0
    %199 = vmatpush1.msra.mxu0 0.0
    %200 = vmatprep.subr.mxu0 0.0
    %201 = vmatpush1.msra.mxu0 0.0
    %202 = vmatprep.subr.mxu0 0.0
    %203 = vmatpush1.msra.mxu0 0.0
    %204 = vmatprep.subr.mxu0 0.0
    %205 = vmatpush1.msra.mxu0 0.0
    %206 = vmatprep.subr.mxu0 0.0
    %207 = vmatpush1.msra.mxu0 0.0
    %208 = vmatprep.subr.mxu0 0.0
    %209 = vmatpush1.msra.mxu0 0.0
    %210 = vmatprep.subr.mxu0 0.0
    %211 = vmatpush1.msra.mxu0 0.0
    %212 = vmatprep.subr.mxu0 0.0
    %213 = vmatpush1.msra.mxu0 0.0
    %214 = vmatprep.subr.mxu0 0.0
    %215 = vmatpush1.msra.mxu0 0.0
    %216 = vmatprep.subr.mxu0 0.0
    %217 = vmatpush1.msra.mxu0 0.0
    %218 = vmatprep.subr.mxu0 0.0
    %219 = vmatpush1.msra.mxu0 0.0
    %220 = vmatprep.subr.mxu0 0.0
    %221 = vmatpush1.msra.mxu0 0.0
    %222 = vmatprep.subr.mxu0 0.0
    %223 = vmatpush1.msra.mxu0 0.0
    %224 = vmatprep.subr.mxu0 0.0
    %225 = vmatpush1.msra.mxu0 0.0
    %226 = vmatprep.subr.mxu0 0.0
    %227 = vmatpush1.msra.mxu0 0.0
    %228 = vmatprep.subr.mxu0 0.0
    %229 = vmatpush1.msra.mxu0 0.0
    %230 = vmatprep.subr.mxu0 0.0
    %231 = vmatpush1.msra.mxu0 0.0
    %232 = vmatprep.subr.mxu0 0.0
    %233 = vmatpush1.msra.mxu0 0.0
    %234 = vmatprep.subr.mxu0 0.0
    %235 = vmatpush1.msra.mxu0 0.0
    %236 = vmatprep.subr.mxu0 0.0
    %237 = vmatpush1.msra.mxu0 0.0
    %238 = vmatprep.subr.mxu0 0.0
    %239 = vmatpush1.msra.mxu0 0.0
    %240 = vmatprep.subr.mxu0 0.0
    %241 = vmatpush1.msra.mxu0 0.0
    %242 = vmatprep.subr.mxu0 0.0
    %243 = vmatpush1.msra.mxu0 0.0
    %244 = vmatprep.subr.mxu0 0.0
    %245 = vmatpush1.msra.mxu0 0.0
    %246 = vmatprep.subr.mxu0 0.0
    %247 = vmatpush1.msra.mxu0 0.0
    %248 = vmatprep.subr.mxu0 0.0
    %249 = vmatpush1.msra.mxu0 0.0
    %250 = vmatprep.mubr.f32.mxu0 0.0
    %251 = vmatmul.mubr.f32.gmra.mrb[0].mxu0 %v181
    %v252 = vpop.f32.mrb[0].mxu0
    %v253 = vadd.f32 %v177, %v252
    %v254 = vpop.f32.mrb[0].mxu0
    %255 = vmatprep.mubr.f32.mxu0 0.0
    %256 = vmatmul.mubr.f32.gmra.mrb[0].mxu0 %v184
    %v257 = vpop.f32.mrb[0].mxu0
    %v258 = vadd.f32 %v177, %v257
    %v259 = vpop.f32.mrb[0].mxu0
    %260 = vdwg.mxu0
    %s261 = scalar_lea.vmem [#allocation10], 32
    %v262 = vld [vmem:[%s261] sm:$0xff]
    %v263 = vld [vmem:[%s261 + $0x8] sm:$0xff]
    %v264 = vld [vmem:[%s261 + $0x10] sm:$0xff]
    %v265 = vld [vmem:[%s261 + $0x18] sm:$0xff]
    %s266 = scalar_lea.vmem [#allocation11], 1
    %v267 = vld [vmem:[%s266] sm:$0x1]
    %v269 = vlaneseq
    %v270 = vshrl.u32 %v269, 7
    %v271 = vsub.s32 0, %v270
    %v272 = vrot.slane %v267, %v271
    %274 = vmatprep.subr.mxu0 0.0
    %275 = vmatpush1.msra.mxu0 %v262
    %276 = vmatprep.subr.mxu0 0.0
    %277 = vmatpush1.msra.mxu0 %v263
    %278 = vmatprep.subr.mxu0 0.0
    %279 = vmatpush1.msra.mxu0 %v264
    %280 = vmatprep.subr.mxu0 0.0
    %281 = vmatpush1.msra.mxu0 %v265
    %282 = vmatprep.subr.mxu0 0.0
    %283 = vmatpush1.msra.mxu0 0.0
    %284 = vmatprep.subr.mxu0 0.0
    %285 = vmatpush1.msra.mxu0 0.0
    %286 = vmatprep.subr.mxu0 0.0
    %287 = vmatpush1.msra.mxu0 0.0
    %288 = vmatprep.subr.mxu0 0.0
    %289 = vmatpush1.msra.mxu0 0.0
    %290 = vmatprep.subr.mxu0 0.0
    %291 = vmatpush1.msra.mxu0 0.0
    %292 = vmatprep.subr.mxu0 0.0
    %293 = vmatpush1.msra.mxu0 0.0
    %294 = vmatprep.subr.mxu0 0.0
    %295 = vmatpush1.msra.mxu0 0.0
    %296 = vmatprep.subr.mxu0 0.0
    %297 = vmatpush1.msra.mxu0 0.0
    %298 = vmatprep.subr.mxu0 0.0
    %299 = vmatpush1.msra.mxu0 0.0
    %300 = vmatprep.subr.mxu0 0.0
    %301 = vmatpush1.msra.mxu0 0.0
    %302 = vmatprep.subr.mxu0 0.0
    %303 = vmatpush1.msra.mxu0 0.0
    %304 = vmatprep.subr.mxu0 0.0
    %305 = vmatpush1.msra.mxu0 0.0
    %306 = vmatprep.subr.mxu0 0.0
    %307 = vmatpush1.msra.mxu0 0.0
    %308 = vmatprep.subr.mxu0 0.0
    %309 = vmatpush1.msra.mxu0 0.0
    %310 = vmatprep.subr.mxu0 0.0
    %311 = vmatpush1.msra.mxu0 0.0
    %312 = vmatprep.subr.mxu0 0.0
    %313 = vmatpush1.msra.mxu0 0.0
    %314 = vmatprep.subr.mxu0 0.0
    %315 = vmatpush1.msra.mxu0 0.0
    %316 = vmatprep.subr.mxu0 0.0
    %317 = vmatpush1.msra.mxu0 0.0
    %318 = vmatprep.subr.mxu0 0.0
    %319 = vmatpush1.msra.mxu0 0.0
    %320 = vmatprep.subr.mxu0 0.0
    %321 = vmatpush1.msra.mxu0 0.0
    %322 = vmatprep.subr.mxu0 0.0
    %323 = vmatpush1.msra.mxu0 0.0
    %324 = vmatprep.subr.mxu0 0.0
    %325 = vmatpush1.msra.mxu0 0.0
    %326 = vmatprep.subr.mxu0 0.0
    %327 = vmatpush1.msra.mxu0 0.0
    %328 = vmatprep.subr.mxu0 0.0
    %329 = vmatpush1.msra.mxu0 0.0
    %330 = vmatprep.subr.mxu0 0.0
    %331 = vmatpush1.msra.mxu0 0.0
    %332 = vmatprep.subr.mxu0 0.0
    %333 = vmatpush1.msra.mxu0 0.0
    %334 = vmatprep.subr.mxu0 0.0
    %335 = vmatpush1.msra.mxu0 0.0
    %336 = vmatprep.subr.mxu0 0.0
    %337 = vmatpush1.msra.mxu0 0.0
    %338 = vmatprep.mubr.f32.mxu0 0.0
    %339 = vmatmul.mubr.f32.gmra.mrb[0].mxu0 %v181
    %v340 = vpop.f32.mrb[0].mxu0
    %v341 = vadd.f32 %v272, %v340
    %v342 = vpop.f32.mrb[0].mxu0
    %343 = vmatprep.mubr.f32.mxu0 0.0
    %344 = vmatmul.mubr.f32.gmra.mrb[0].mxu0 %v184
    %v345 = vpop.f32.mrb[0].mxu0
    %v346 = vadd.f32 %v272, %v345
    %v347 = vpop.f32.mrb[0].mxu0
    %348 = vdwg.mxu0
    %s349 = scalar_lea.vmem [#allocation10], 64
    %v350 = vld [vmem:[%s349] sm:$0xff]
    %v351 = vld [vmem:[%s349 + $0x8] sm:$0xff]
    %v352 = vld [vmem:[%s349 + $0x10] sm:$0xff]
    %v353 = vld [vmem:[%s349 + $0x18] sm:$0xff]
    %s354 = scalar_lea.vmem [#allocation11], 2
    %v355 = vld [vmem:[%s354] sm:$0x1]
    %v357 = vlaneseq
    %v358 = vshrl.u32 %v357, 7
    %v359 = vsub.s32 0, %v358
    %v360 = vrot.slane %v355, %v359
    %362 = vmatprep.subr.mxu0 0.0
    %363 = vmatpush1.msra.mxu0 %v350
    %364 = vmatprep.subr.mxu0 0.0
    %365 = vmatpush1.msra.mxu0 %v351
    %366 = vmatprep.subr.mxu0 0.0
    %367 = vmatpush1.msra.mxu0 %v352
    %368 = vmatprep.subr.mxu0 0.0
    %369 = vmatpush1.msra.mxu0 %v353
    %370 = vmatprep.subr.mxu0 0.0
    %371 = vmatpush1.msra.mxu0 0.0
    %372 = vmatprep.subr.mxu0 0.0
    %373 = vmatpush1.msra.mxu0 0.0
    %374 = vmatprep.subr.mxu0 0.0
    %375 = vmatpush1.msra.mxu0 0.0
    %376 = vmatprep.subr.mxu0 0.0
    %377 = vmatpush1.msra.mxu0 0.0
    %378 = vmatprep.subr.mxu0 0.0
    %379 = vmatpush1.msra.mxu0 0.0
    %380 = vmatprep.subr.mxu0 0.0
    %381 = vmatpush1.msra.mxu0 0.0
    %382 = vmatprep.subr.mxu0 0.0
    %383 = vmatpush1.msra.mxu0 0.0
    %384 = vmatprep.subr.mxu0 0.0
    %385 = vmatpush1.msra.mxu0 0.0
    %386 = vmatprep.subr.mxu0 0.0
    %387 = vmatpush1.msra.mxu0 0.0
    %388 = vmatprep.subr.mxu0 0.0
    %389 = vmatpush1.msra.mxu0 0.0
    %390 = vmatprep.subr.mxu0 0.0
    %391 = vmatpush1.msra.mxu0 0.0
    %392 = vmatprep.subr.mxu0 0.0
    %393 = vmatpush1.msra.mxu0 0.0
    %394 = vmatprep.subr.mxu0 0.0
    %395 = vmatpush1.msra.mxu0 0.0
    %396 = vmatprep.subr.mxu0 0.0
    %397 = vmatpush1.msra.mxu0 0.0
    %398 = vmatprep.subr.mxu0 0.0
    %399 = vmatpush1.msra.mxu0 0.0
    %400 = vmatprep.subr.mxu0 0.0
    %401 = vmatpush1.msra.mxu0 0.0
    %402 = vmatprep.subr.mxu0 0.0
    %403 = vmatpush1.msra.mxu0 0.0
    %404 = vmatprep.subr.mxu0 0.0
    %405 = vmatpush1.msra.mxu0 0.0
    %406 = vmatprep.subr.mxu0 0.0
    %407 = vmatpush1.msra.mxu0 0.0
    %408 = vmatprep.subr.mxu0 0.0
    %409 = vmatpush1.msra.mxu0 0.0
    %410 = vmatprep.subr.mxu0 0.0
    %411 = vmatpush1.msra.mxu0 0.0
    %412 = vmatprep.subr.mxu0 0.0
    %413 = vmatpush1.msra.mxu0 0.0
    %414 = vmatprep.subr.mxu0 0.0
    %415 = vmatpush1.msra.mxu0 0.0
    %416 = vmatprep.subr.mxu0 0.0
    %417 = vmatpush1.msra.mxu0 0.0
    %418 = vmatprep.subr.mxu0 0.0
    %419 = vmatpush1.msra.mxu0 0.0
    %420 = vmatprep.subr.mxu0 0.0
    %421 = vmatpush1.msra.mxu0 0.0
    %422 = vmatprep.subr.mxu0 0.0
    %423 = vmatpush1.msra.mxu0 0.0
    %424 = vmatprep.subr.mxu0 0.0
    %425 = vmatpush1.msra.mxu0 0.0
    %426 = vmatprep.mubr.f32.mxu0 0.0
    %427 = vmatmul.mubr.f32.gmra.mrb[0].mxu0 %v181
    %v428 = vpop.f32.mrb[0].mxu0
    %v429 = vadd.f32 %v360, %v428
    %v430 = vpop.f32.mrb[0].mxu0
    %431 = vmatprep.mubr.f32.mxu0 0.0
    %432 = vmatmul.mubr.f32.gmra.mrb[0].mxu0 %v184
    %v433 = vpop.f32.mrb[0].mxu0
    %v434 = vadd.f32 %v360, %v433
    %v435 = vpop.f32.mrb[0].mxu0
    %436 = vdwg.mxu0
    %s437 = scalar_lea.vmem [#allocation10], 96
    %v438 = vld [vmem:[%s437] sm:$0xff]
    %v439 = vld [vmem:[%s437 + $0x8] sm:$0xff]
    %v440 = vld [vmem:[%s437 + $0x10] sm:$0xff]
    %v441 = vld [vmem:[%s437 + $0x18] sm:$0xff]
    %s442 = scalar_lea.vmem [#allocation11], 3
    %v443 = vld [vmem:[%s442] sm:$0x1]
    %v445 = vlaneseq
    %v446 = vshrl.u32 %v445, 7
    %v447 = vsub.s32 0, %v446
    %v448 = vrot.slane %v443, %v447
    %450 = vmatprep.subr.mxu0 0.0
    %451 = vmatpush1.msra.mxu0 %v438
    %452 = vmatprep.subr.mxu0 0.0
    %453 = vmatpush1.msra.mxu0 %v439
    %454 = vmatprep.subr.mxu0 0.0
    %455 = vmatpush1.msra.mxu0 %v440
    %456 = vmatprep.subr.mxu0 0.0
    %457 = vmatpush1.msra.mxu0 %v441
    %458 = vmatprep.subr.mxu0 0.0
    %459 = vmatpush1.msra.mxu0 0.0
    %460 = vmatprep.subr.mxu0 0.0
    %461 = vmatpush1.msra.mxu0 0.0
    %462 = vmatprep.subr.mxu0 0.0
    %463 = vmatpush1.msra.mxu0 0.0
    %464 = vmatprep.subr.mxu0 0.0
    %465 = vmatpush1.msra.mxu0 0.0
    %466 = vmatprep.subr.mxu0 0.0
    %467 = vmatpush1.msra.mxu0 0.0
    %468 = vmatprep.subr.mxu0 0.0
    %469 = vmatpush1.msra.mxu0 0.0
    %470 = vmatprep.subr.mxu0 0.0
    %471 = vmatpush1.msra.mxu0 0.0
    %472 = vmatprep.subr.mxu0 0.0
    %473 = vmatpush1.msra.mxu0 0.0
    %474 = vmatprep.subr.mxu0 0.0
    %475 = vmatpush1.msra.mxu0 0.0
    %476 = vmatprep.subr.mxu0 0.0
    %477 = vmatpush1.msra.mxu0 0.0
    %478 = vmatprep.subr.mxu0 0.0
    %479 = vmatpush1.msra.mxu0 0.0
    %480 = vmatprep.subr.mxu0 0.0
    %481 = vmatpush1.msra.mxu0 0.0
    %482 = vmatprep.subr.mxu0 0.0
    %483 = vmatpush1.msra.mxu0 0.0
    %484 = vmatprep.subr.mxu0 0.0
    %485 = vmatpush1.msra.mxu0 0.0
    %486 = vmatprep.subr.mxu0 0.0
    %487 = vmatpush1.msra.mxu0 0.0
    %488 = vmatprep.subr.mxu0 0.0
    %489 = vmatpush1.msra.mxu0 0.0
    %490 = vmatprep.subr.mxu0 0.0
    %491 = vmatpush1.msra.mxu0 0.0
    %492 = vmatprep.subr.mxu0 0.0
    %493 = vmatpush1.msra.mxu0 0.0
    %494 = vmatprep.subr.mxu0 0.0
    %495 = vmatpush1.msra.mxu0 0.0
    %496 = vmatprep.subr.mxu0 0.0
    %497 = vmatpush1.msra.mxu0 0.0
    %498 = vmatprep.subr.mxu0 0.0
    %499 = vmatpush1.msra.mxu0 0.0
    %500 = vmatprep.subr.mxu0 0.0
    %501 = vmatpush1.msra.mxu0 0.0
    %502 = vmatprep.subr.mxu0 0.0
    %503 = vmatpush1.msra.mxu0 0.0
    %504 = vmatprep.subr.mxu0 0.0
    %505 = vmatpush1.msra.mxu0 0.0
    %506 = vmatprep.subr.mxu0 0.0
    %507 = vmatpush1.msra.mxu0 0.0
    %508 = vmatprep.subr.mxu0 0.0
    %509 = vmatpush1.msra.mxu0 0.0
    %510 = vmatprep.subr.mxu0 0.0
    %511 = vmatpush1.msra.mxu0 0.0
    %512 = vmatprep.subr.mxu0 0.0
    %513 = vmatpush1.msra.mxu0 0.0
    %514 = vmatprep.mubr.f32.mxu0 0.0
    %515 = vmatmul.mubr.f32.gmra.mrb[0].mxu0 %v181
    %v516 = vpop.f32.mrb[0].mxu0
    %v517 = vadd.f32 %v448, %v516
    %v518 = vpop.f32.mrb[0].mxu0
    %519 = vmatprep.mubr.f32.mxu0 0.0
    %520 = vmatmul.mubr.f32.gmra.mrb[0].mxu0 %v184
    %v521 = vpop.f32.mrb[0].mxu0
    %v522 = vadd.f32 %v448, %v521
    %v523 = vpop.f32.mrb[0].mxu0
    %524 = vdwg.mxu0
    %v525 = vld [vmem:[#allocation5] sm:$0xff]
    %v526 = vld [vmem:[#allocation5 + $0x8] sm:$0xff]
    %v527 = vld [vmem:[#allocation5 + $0x10] sm:$0xff]
    %v528 = vld [vmem:[#allocation5 + $0x18] sm:$0xff]
    %v529 = vld [vmem:[#allocation5 + $0x20] sm:$0xff]
    %v530 = vld [vmem:[#allocation5 + $0x28] sm:$0xff]
    %v531 = vld [vmem:[#allocation5 + $0x30] sm:$0xff]
    %v532 = vld [vmem:[#allocation5 + $0x38] sm:$0xff]
    %v533 = vld [vmem:[#allocation7] sm:$0xff]
    %v534 = vld [vmem:[#allocation7 + $0x8] sm:$0xff]
    %v535 = vld [vmem:[#allocation7 + $0x10] sm:$0xff]
    %v536 = vld [vmem:[#allocation7 + $0x18] sm:$0xff]
    %v537 = vld [vmem:[#allocation7 + $0x20] sm:$0xff]
    %v538 = vld [vmem:[#allocation7 + $0x28] sm:$0xff]
    %v539 = vld [vmem:[#allocation7 + $0x30] sm:$0xff]
    %v540 = vld [vmem:[#allocation7 + $0x38] sm:$0xff]
    %v541 = vld [vmem:[#allocation8] sm:$0xff]
    %v542 = vld [vmem:[#allocation8 + $0x8] sm:$0xff]
    %v543 = vld [vmem:[#allocation8 + $0x10] sm:$0xff]
    %v544 = vld [vmem:[#allocation8 + $0x18] sm:$0xff]
    %v545 = vld [vmem:[#allocation8 + $0x20] sm:$0xff]
    %v546 = vld [vmem:[#allocation8 + $0x28] sm:$0xff]
    %v547 = vld [vmem:[#allocation8 + $0x30] sm:$0xff]
    %v548 = vld [vmem:[#allocation8 + $0x38] sm:$0xff]
    %vm549 = vcmask 64512
    %v551 = vsel %vm549, %v253, 0
    %v554 = vsel %vm549, %v525, 0
    %556 = vmatprep.subr.mxu0 0.0
    %557 = vmatpush1.xpose.msra.mxu0 %v554
    %558 = vmatprep.subr.mxu0 0.0
    %559 = vmatpush1.xpose.msra.mxu0 0.0
    %560 = vmatprep.subr.mxu0 0.0
    %561 = vmatpush1.xpose.msra.mxu0 0.0
    %562 = vmatprep.subr.mxu0 0.0
    %563 = vmatpush1.xpose.msra.mxu0 0.0
    %564 = vmatprep.subr.mxu0 0.0
    %565 = vmatpush1.xpose.msra.mxu0 0.0
    %566 = vmatprep.subr.mxu0 0.0
    %567 = vmatpush1.xpose.msra.mxu0 0.0
    %568 = vmatprep.subr.mxu0 0.0
    %569 = vmatpush1.xpose.msra.mxu0 0.0
    %570 = vmatprep.subr.mxu0 0.0
    %571 = vmatpush1.xpose.msra.mxu0 0.0
    %572 = vmatprep.subr.mxu0 0.0
    %573 = vmatpush1.xpose.msra.mxu0 0.0
    %574 = vmatprep.subr.mxu0 0.0
    %575 = vmatpush1.xpose.msra.mxu0 0.0
    %576 = vmatprep.subr.mxu0 0.0
    %577 = vmatpush1.xpose.msra.mxu0 0.0
    %578 = vmatprep.subr.mxu0 0.0
    %579 = vmatpush1.xpose.msra.mxu0 0.0
    %580 = vmatprep.subr.mxu0 0.0
    %581 = vmatpush1.xpose.msra.mxu0 0.0
    %582 = vmatprep.subr.mxu0 0.0
    %583 = vmatpush1.xpose.msra.mxu0 0.0
    %584 = vmatprep.subr.mxu0 0.0
    %585 = vmatpush1.xpose.msra.mxu0 0.0
    %586 = vmatprep.subr.mxu0 0.0
    %587 = vmatpush1.xpose.msra.mxu0 0.0
    %588 = vmatprep.subr.mxu0 0.0
    %589 = vmatpush1.xpose.msra.mxu0 0.0
    %590 = vmatprep.subr.mxu0 0.0
    %591 = vmatpush1.xpose.msra.mxu0 0.0
    %592 = vmatprep.subr.mxu0 0.0
    %593 = vmatpush1.xpose.msra.mxu0 0.0
    %594 = vmatprep.subr.mxu0 0.0
    %595 = vmatpush1.xpose.msra.mxu0 0.0
    %596 = vmatprep.subr.mxu0 0.0
    %597 = vmatpush1.xpose.msra.mxu0 0.0
    %598 = vmatprep.subr.mxu0 0.0
    %599 = vmatpush1.xpose.msra.mxu0 0.0
    %600 = vmatprep.subr.mxu0 0.0
    %601 = vmatpush1.xpose.msra.mxu0 0.0
    %602 = vmatprep.subr.mxu0 0.0
    %603 = vmatpush1.xpose.msra.mxu0 0.0
    %604 = vmatprep.subr.mxu0 0.0
    %605 = vmatpush1.xpose.msra.mxu0 0.0
    %606 = vmatprep.subr.mxu0 0.0
    %607 = vmatpush1.xpose.msra.mxu0 0.0
    %608 = vmatprep.subr.mxu0 0.0
    %609 = vmatpush1.xpose.msra.mxu0 0.0
    %610 = vmatprep.subr.mxu0 0.0
    %611 = vmatpush1.xpose.msra.mxu0 0.0
    %612 = vmatprep.subr.mxu0 0.0
    %613 = vmatpush1.xpose.msra.mxu0 0.0
    %614 = vmatprep.subr.mxu0 0.0
    %615 = vmatpush1.xpose.msra.mxu0 0.0
    %616 = vmatprep.subr.mxu0 0.0
    %617 = vmatpush1.xpose.msra.mxu0 0.0
    %618 = vmatprep.subr.mxu0 0.0
    %619 = vmatpush1.xpose.msra.mxu0 0.0
    %620 = vmatprep.mubr.f32.mxu0 0.0
    %621 = vmatmul.mubr.f32.gmra.mrb[0].mxu0 %v551
    %v622 = vpop.f32.mrb[0].mxu0
    %v623 = vadd.f32 %v541, %v622
    %v624 = vpop.f32.mrb[0].mxu0
    %625 = vdwg.mxu0
    %v627 = vsel %vm549, %v341, 0
    %v630 = vsel %vm549, %v526, 0
    %632 = vmatprep.subr.mxu0 0.0
    %633 = vmatpush1.xpose.msra.mxu0 %v630
    %634 = vmatprep.subr.mxu0 0.0
    %635 = vmatpush1.xpose.msra.mxu0 0.0
    %636 = vmatprep.subr.mxu0 0.0
    %637 = vmatpush1.xpose.msra.mxu0 0.0
    %638 = vmatprep.subr.mxu0 0.0
    %639 = vmatpush1.xpose.msra.mxu0 0.0
    %640 = vmatprep.subr.mxu0 0.0
    %641 = vmatpush1.xpose.msra.mxu0 0.0
    %642 = vmatprep.subr.mxu0 0.0
    %643 = vmatpush1.xpose.msra.mxu0 0.0
    %644 = vmatprep.subr.mxu0 0.0
    %645 = vmatpush1.xpose.msra.mxu0 0.0
    %646 = vmatprep.subr.mxu0 0.0
    %647 = vmatpush1.xpose.msra.mxu0 0.0
    %648 = vmatprep.subr.mxu0 0.0
    %649 = vmatpush1.xpose.msra.mxu0 0.0
    %650 = vmatprep.subr.mxu0 0.0
    %651 = vmatpush1.xpose.msra.mxu0 0.0
    %652 = vmatprep.subr.mxu0 0.0
    %653 = vmatpush1.xpose.msra.mxu0 0.0
    %654 = vmatprep.subr.mxu0 0.0
    %655 = vmatpush1.xpose.msra.mxu0 0.0
    %656 = vmatprep.subr.mxu0 0.0
    %657 = vmatpush1.xpose.msra.mxu0 0.0
    %658 = vmatprep.subr.mxu0 0.0
    %659 = vmatpush1.xpose.msra.mxu0 0.0
    %660 = vmatprep.subr.mxu0 0.0
    %661 = vmatpush1.xpose.msra.mxu0 0.0
    %662 = vmatprep.subr.mxu0 0.0
    %663 = vmatpush1.xpose.msra.mxu0 0.0
    %664 = vmatprep.subr.mxu0 0.0
    %665 = vmatpush1.xpose.msra.mxu0 0.0
    %666 = vmatprep.subr.mxu0 0.0
    %667 = vmatpush1.xpose.msra.mxu0 0.0
    %668 = vmatprep.subr.mxu0 0.0
    %669 = vmatpush1.xpose.msra.mxu0 0.0
    %670 = vmatprep.subr.mxu0 0.0
    %671 = vmatpush1.xpose.msra.mxu0 0.0
    %672 = vmatprep.subr.mxu0 0.0
    %673 = vmatpush1.xpose.msra.mxu0 0.0
    %674 = vmatprep.subr.mxu0 0.0
    %675 = vmatpush1.xpose.msra.mxu0 0.0
    %676 = vmatprep.subr.mxu0 0.0
    %677 = vmatpush1.xpose.msra.mxu0 0.0
    %678 = vmatprep.subr.mxu0 0.0
    %679 = vmatpush1.xpose.msra.mxu0 0.0
    %680 = vmatprep.subr.mxu0 0.0
    %681 = vmatpush1.xpose.msra.mxu0 0.0
    %682 = vmatprep.subr.mxu0 0.0
    %683 = vmatpush1.xpose.msra.mxu0 0.0
    %684 = vmatprep.subr.mxu0 0.0
    %685 = vmatpush1.xpose.msra.mxu0 0.0
    %686 = vmatprep.subr.mxu0 0.0
    %687 = vmatpush1.xpose.msra.mxu0 0.0
    %688 = vmatprep.subr.mxu0 0.0
    %689 = vmatpush1.xpose.msra.mxu0 0.0
    %690 = vmatprep.subr.mxu0 0.0
    %691 = vmatpush1.xpose.msra.mxu0 0.0
    %692 = vmatprep.subr.mxu0 0.0
    %693 = vmatpush1.xpose.msra.mxu0 0.0
    %694 = vmatprep.subr.mxu0 0.0
    %695 = vmatpush1.xpose.msra.mxu0 0.0
    %696 = vmatprep.mubr.f32.mxu0 0.0
    %697 = vmatmul.mubr.f32.gmra.mrb[0].mxu0 %v627
    %v698 = vpop.f32.mrb[0].mxu0
    %v699 = vadd.f32 %v542, %v698
    %v700 = vpop.f32.mrb[0].mxu0
    %701 = vdwg.mxu0
    %v703 = vsel %vm549, %v429, 0
    %v706 = vsel %vm549, %v527, 0
    %708 = vmatprep.subr.mxu0 0.0
    %709 = vmatpush1.xpose.msra.mxu0 %v706
    %710 = vmatprep.subr.mxu0 0.0
    %711 = vmatpush1.xpose.msra.mxu0 0.0
    %712 = vmatprep.subr.mxu0 0.0
    %713 = vmatpush1.xpose.msra.mxu0 0.0
    %714 = vmatprep.subr.mxu0 0.0
    %715 = vmatpush1.xpose.msra.mxu0 0.0
    %716 = vmatprep.subr.mxu0 0.0
    %717 = vmatpush1.xpose.msra.mxu0 0.0
    %718 = vmatprep.subr.mxu0 0.0
    %719 = vmatpush1.xpose.msra.mxu0 0.0
    %720 = vmatprep.subr.mxu0 0.0
    %721 = vmatpush1.xpose.msra.mxu0 0.0
    %722 = vmatprep.subr.mxu0 0.0
    %723 = vmatpush1.xpose.msra.mxu0 0.0
    %724 = vmatprep.subr.mxu0 0.0
    %725 = vmatpush1.xpose.msra.mxu0 0.0
    %726 = vmatprep.subr.mxu0 0.0
    %727 = vmatpush1.xpose.msra.mxu0 0.0
    %728 = vmatprep.subr.mxu0 0.0
    %729 = vmatpush1.xpose.msra.mxu0 0.0
    %730 = vmatprep.subr.mxu0 0.0
    %731 = vmatpush1.xpose.msra.mxu0 0.0
    %732 = vmatprep.subr.mxu0 0.0
    %733 = vmatpush1.xpose.msra.mxu0 0.0
    %734 = vmatprep.subr.mxu0 0.0
    %735 = vmatpush1.xpose.msra.mxu0 0.0
    %736 = vmatprep.subr.mxu0 0.0
    %737 = vmatpush1.xpose.msra.mxu0 0.0
    %738 = vmatprep.subr.mxu0 0.0
    %739 = vmatpush1.xpose.msra.mxu0 0.0
    %740 = vmatprep.subr.mxu0 0.0
    %741 = vmatpush1.xpose.msra.mxu0 0.0
    %742 = vmatprep.subr.mxu0 0.0
    %743 = vmatpush1.xpose.msra.mxu0 0.0
    %744 = vmatprep.subr.mxu0 0.0
    %745 = vmatpush1.xpose.msra.mxu0 0.0
    %746 = vmatprep.subr.mxu0 0.0
    %747 = vmatpush1.xpose.msra.mxu0 0.0
    %748 = vmatprep.subr.mxu0 0.0
    %749 = vmatpush1.xpose.msra.mxu0 0.0
    %750 = vmatprep.subr.mxu0 0.0
    %751 = vmatpush1.xpose.msra.mxu0 0.0
    %752 = vmatprep.subr.mxu0 0.0
    %753 = vmatpush1.xpose.msra.mxu0 0.0
    %754 = vmatprep.subr.mxu0 0.0
    %755 = vmatpush1.xpose.msra.mxu0 0.0
    %756 = vmatprep.subr.mxu0 0.0
    %757 = vmatpush1.xpose.msra.mxu0 0.0
    %758 = vmatprep.subr.mxu0 0.0
    %759 = vmatpush1.xpose.msra.mxu0 0.0
    %760 = vmatprep.subr.mxu0 0.0
    %761 = vmatpush1.xpose.msra.mxu0 0.0
    %762 = vmatprep.subr.mxu0 0.0
    %763 = vmatpush1.xpose.msra.mxu0 0.0
    %764 = vmatprep.subr.mxu0 0.0
    %765 = vmatpush1.xpose.msra.mxu0 0.0
    %766 = vmatprep.subr.mxu0 0.0
    %767 = vmatpush1.xpose.msra.mxu0 0.0
    %768 = vmatprep.subr.mxu0 0.0
    %769 = vmatpush1.xpose.msra.mxu0 0.0
    %770 = vmatprep.subr.mxu0 0.0
    %771 = vmatpush1.xpose.msra.mxu0 0.0
    %772 = vmatprep.mubr.f32.mxu0 0.0
    %773 = vmatmul.mubr.f32.gmra.mrb[0].mxu0 %v703
    %v774 = vpop.f32.mrb[0].mxu0
    %v775 = vadd.f32 %v543, %v774
    %v776 = vpop.f32.mrb[0].mxu0
    %777 = vdwg.mxu0
    %v779 = vsel %vm549, %v517, 0
    %v782 = vsel %vm549, %v528, 0
    %784 = vmatprep.subr.mxu0 0.0
    %785 = vmatpush1.xpose.msra.mxu0 %v782
    %786 = vmatprep.subr.mxu0 0.0
    %787 = vmatpush1.xpose.msra.mxu0 0.0
    %788 = vmatprep.subr.mxu0 0.0
    %789 = vmatpush1.xpose.msra.mxu0 0.0
    %790 = vmatprep.subr.mxu0 0.0
    %791 = vmatpush1.xpose.msra.mxu0 0.0
    %792 = vmatprep.subr.mxu0 0.0
    %793 = vmatpush1.xpose.msra.mxu0 0.0
    %794 = vmatprep.subr.mxu0 0.0
    %795 = vmatpush1.xpose.msra.mxu0 0.0
    %796 = vmatprep.subr.mxu0 0.0
    %797 = vmatpush1.xpose.msra.mxu0 0.0
    %798 = vmatprep.subr.mxu0 0.0
    %799 = vmatpush1.xpose.msra.mxu0 0.0
    %800 = vmatprep.subr.mxu0 0.0
    %801 = vmatpush1.xpose.msra.mxu0 0.0
    %802 = vmatprep.subr.mxu0 0.0
    %803 = vmatpush1.xpose.msra.mxu0 0.0
    %804 = vmatprep.subr.mxu0 0.0
    %805 = vmatpush1.xpose.msra.mxu0 0.0
    %806 = vmatprep.subr.mxu0 0.0
    %807 = vmatpush1.xpose.msra.mxu0 0.0
    %808 = vmatprep.subr.mxu0 0.0
    %809 = vmatpush1.xpose.msra.mxu0 0.0
    %810 = vmatprep.subr.mxu0 0.0
    %811 = vmatpush1.xpose.msra.mxu0 0.0
    %812 = vmatprep.subr.mxu0 0.0
    %813 = vmatpush1.xpose.msra.mxu0 0.0
    %814 = vmatprep.subr.mxu0 0.0
    %815 = vmatpush1.xpose.msra.mxu0 0.0
    %816 = vmatprep.subr.mxu0 0.0
    %817 = vmatpush1.xpose.msra.mxu0 0.0
    %818 = vmatprep.subr.mxu0 0.0
    %819 = vmatpush1.xpose.msra.mxu0 0.0
    %820 = vmatprep.subr.mxu0 0.0
    %821 = vmatpush1.xpose.msra.mxu0 0.0
    %822 = vmatprep.subr.mxu0 0.0
    %823 = vmatpush1.xpose.msra.mxu0 0.0
    %824 = vmatprep.subr.mxu0 0.0
    %825 = vmatpush1.xpose.msra.mxu0 0.0
    %826 = vmatprep.subr.mxu0 0.0
    %827 = vmatpush1.xpose.msra.mxu0 0.0
    %828 = vmatprep.subr.mxu0 0.0
    %829 = vmatpush1.xpose.msra.mxu0 0.0
    %830 = vmatprep.subr.mxu0 0.0
    %831 = vmatpush1.xpose.msra.mxu0 0.0
    %832 = vmatprep.subr.mxu0 0.0
    %833 = vmatpush1.xpose.msra.mxu0 0.0
    %834 = vmatprep.subr.mxu0 0.0
    %835 = vmatpush1.xpose.msra.mxu0 0.0
    %836 = vmatprep.subr.mxu0 0.0
    %837 = vmatpush1.xpose.msra.mxu0 0.0
    %838 = vmatprep.subr.mxu0 0.0
    %839 = vmatpush1.xpose.msra.mxu0 0.0
    %840 = vmatprep.subr.mxu0 0.0
    %841 = vmatpush1.xpose.msra.mxu0 0.0
    %842 = vmatprep.subr.mxu0 0.0
    %843 = vmatpush1.xpose.msra.mxu0 0.0
    %844 = vmatprep.subr.mxu0 0.0
    %845 = vmatpush1.xpose.msra.mxu0 0.0
    %846 = vmatprep.subr.mxu0 0.0
    %847 = vmatpush1.xpose.msra.mxu0 0.0
    %848 = vmatprep.mubr.f32.mxu0 0.0
    %849 = vmatmul.mubr.f32.gmra.mrb[0].mxu0 %v779
    %v850 = vpop.f32.mrb[0].mxu0
    %v851 = vadd.f32 %v544, %v850
    %v852 = vpop.f32.mrb[0].mxu0
    %853 = vdwg.mxu0
    %v855 = vsel %vm549, %v258, 0
    %v858 = vsel %vm549, %v529, 0
    %860 = vmatprep.subr.mxu0 0.0
    %861 = vmatpush1.xpose.msra.mxu0 %v858
    %862 = vmatprep.subr.mxu0 0.0
    %863 = vmatpush1.xpose.msra.mxu0 0.0
    %864 = vmatprep.subr.mxu0 0.0
    %865 = vmatpush1.xpose.msra.mxu0 0.0
    %866 = vmatprep.subr.mxu0 0.0
    %867 = vmatpush1.xpose.msra.mxu0 0.0
    %868 = vmatprep.subr.mxu0 0.0
    %869 = vmatpush1.xpose.msra.mxu0 0.0
    %870 = vmatprep.subr.mxu0 0.0
    %871 = vmatpush1.xpose.msra.mxu0 0.0
    %872 = vmatprep.subr.mxu0 0.0
    %873 = vmatpush1.xpose.msra.mxu0 0.0
    %874 = vmatprep.subr.mxu0 0.0
    %875 = vmatpush1.xpose.msra.mxu0 0.0
    %876 = vmatprep.subr.mxu0 0.0
    %877 = vmatpush1.xpose.msra.mxu0 0.0
    %878 = vmatprep.subr.mxu0 0.0
    %879 = vmatpush1.xpose.msra.mxu0 0.0
    %880 = vmatprep.subr.mxu0 0.0
    %881 = vmatpush1.xpose.msra.mxu0 0.0
    %882 = vmatprep.subr.mxu0 0.0
    %883 = vmatpush1.xpose.msra.mxu0 0.0
    %884 = vmatprep.subr.mxu0 0.0
    %885 = vmatpush1.xpose.msra.mxu0 0.0
    %886 = vmatprep.subr.mxu0 0.0
    %887 = vmatpush1.xpose.msra.mxu0 0.0
    %888 = vmatprep.subr.mxu0 0.0
    %889 = vmatpush1.xpose.msra.mxu0 0.0
    %890 = vmatprep.subr.mxu0 0.0
    %891 = vmatpush1.xpose.msra.mxu0 0.0
    %892 = vmatprep.subr.mxu0 0.0
    %893 = vmatpush1.xpose.msra.mxu0 0.0
    %894 = vmatprep.subr.mxu0 0.0
    %895 = vmatpush1.xpose.msra.mxu0 0.0
    %896 = vmatprep.subr.mxu0 0.0
    %897 = vmatpush1.xpose.msra.mxu0 0.0
    %898 = vmatprep.subr.mxu0 0.0
    %899 = vmatpush1.xpose.msra.mxu0 0.0
    %900 = vmatprep.subr.mxu0 0.0
    %901 = vmatpush1.xpose.msra.mxu0 0.0
    %902 = vmatprep.subr.mxu0 0.0
    %903 = vmatpush1.xpose.msra.mxu0 0.0
    %904 = vmatprep.subr.mxu0 0.0
    %905 = vmatpush1.xpose.msra.mxu0 0.0
    %906 = vmatprep.subr.mxu0 0.0
    %907 = vmatpush1.xpose.msra.mxu0 0.0
    %908 = vmatprep.subr.mxu0 0.0
    %909 = vmatpush1.xpose.msra.mxu0 0.0
    %910 = vmatprep.subr.mxu0 0.0
    %911 = vmatpush1.xpose.msra.mxu0 0.0
    %912 = vmatprep.subr.mxu0 0.0
    %913 = vmatpush1.xpose.msra.mxu0 0.0
    %914 = vmatprep.subr.mxu0 0.0
    %915 = vmatpush1.xpose.msra.mxu0 0.0
    %916 = vmatprep.subr.mxu0 0.0
    %917 = vmatpush1.xpose.msra.mxu0 0.0
    %918 = vmatprep.subr.mxu0 0.0
    %919 = vmatpush1.xpose.msra.mxu0 0.0
    %920 = vmatprep.subr.mxu0 0.0
    %921 = vmatpush1.xpose.msra.mxu0 0.0
    %922 = vmatprep.subr.mxu0 0.0
    %923 = vmatpush1.xpose.msra.mxu0 0.0
    %924 = vmatprep.mubr.f32.mxu0 0.0
    %925 = vmatmul.mubr.f32.gmra.mrb[0].mxu0 %v855
    %v926 = vpop.f32.mrb[0].mxu0
    %v927 = vadd.f32 %v545, %v926
    %v928 = vpop.f32.mrb[0].mxu0
    %929 = vdwg.mxu0
    %v931 = vsel %vm549, %v346, 0
    %v934 = vsel %vm549, %v530, 0
    %936 = vmatprep.subr.mxu0 0.0
    %937 = vmatpush1.xpose.msra.mxu0 %v934
    %938 = vmatprep.subr.mxu0 0.0
    %939 = vmatpush1.xpose.msra.mxu0 0.0
    %940 = vmatprep.subr.mxu0 0.0
    %941 = vmatpush1.xpose.msra.mxu0 0.0
    %942 = vmatprep.subr.mxu0 0.0
    %943 = vmatpush1.xpose.msra.mxu0 0.0
    %944 = vmatprep.subr.mxu0 0.0
    %945 = vmatpush1.xpose.msra.mxu0 0.0
    %946 = vmatprep.subr.mxu0 0.0
    %947 = vmatpush1.xpose.msra.mxu0 0.0
    %948 = vmatprep.subr.mxu0 0.0
    %949 = vmatpush1.xpose.msra.mxu0 0.0
    %950 = vmatprep.subr.mxu0 0.0
    %951 = vmatpush1.xpose.msra.mxu0 0.0
    %952 = vmatprep.subr.mxu0 0.0
    %953 = vmatpush1.xpose.msra.mxu0 0.0
    %954 = vmatprep.subr.mxu0 0.0
    %955 = vmatpush1.xpose.msra.mxu0 0.0
    %956 = vmatprep.subr.mxu0 0.0
    %957 = vmatpush1.xpose.msra.mxu0 0.0
    %958 = vmatprep.subr.mxu0 0.0
    %959 = vmatpush1.xpose.msra.mxu0 0.0
    %960 = vmatprep.subr.mxu0 0.0
    %961 = vmatpush1.xpose.msra.mxu0 0.0
    %962 = vmatprep.subr.mxu0 0.0
    %963 = vmatpush1.xpose.msra.mxu0 0.0
    %964 = vmatprep.subr.mxu0 0.0
    %965 = vmatpush1.xpose.msra.mxu0 0.0
    %966 = vmatprep.subr.mxu0 0.0
    %967 = vmatpush1.xpose.msra.mxu0 0.0
    %968 = vmatprep.subr.mxu0 0.0
    %969 = vmatpush1.xpose.msra.mxu0 0.0
    %970 = vmatprep.subr.mxu0 0.0
    %971 = vmatpush1.xpose.msra.mxu0 0.0
    %972 = vmatprep.subr.mxu0 0.0
    %973 = vmatpush1.xpose.msra.mxu0 0.0
    %974 = vmatprep.subr.mxu0 0.0
    %975 = vmatpush1.xpose.msra.mxu0 0.0
    %976 = vmatprep.subr.mxu0 0.0
    %977 = vmatpush1.xpose.msra.mxu0 0.0
    %978 = vmatprep.subr.mxu0 0.0
    %979 = vmatpush1.xpose.msra.mxu0 0.0
    %980 = vmatprep.subr.mxu0 0.0
    %981 = vmatpush1.xpose.msra.mxu0 0.0
    %982 = vmatprep.subr.mxu0 0.0
    %983 = vmatpush1.xpose.msra.mxu0 0.0
    %984 = vmatprep.subr.mxu0 0.0
    %985 = vmatpush1.xpose.msra.mxu0 0.0
    %986 = vmatprep.subr.mxu0 0.0
    %987 = vmatpush1.xpose.msra.mxu0 0.0
    %988 = vmatprep.subr.mxu0 0.0
    %989 = vmatpush1.xpose.msra.mxu0 0.0
    %990 = vmatprep.subr.mxu0 0.0
    %991 = vmatpush1.xpose.msra.mxu0 0.0
    %992 = vmatprep.subr.mxu0 0.0
    %993 = vmatpush1.xpose.msra.mxu0 0.0
    %994 = vmatprep.subr.mxu0 0.0
    %995 = vmatpush1.xpose.msra.mxu0 0.0
    %996 = vmatprep.subr.mxu0 0.0
    %997 = vmatpush1.xpose.msra.mxu0 0.0
    %998 = vmatprep.subr.mxu0 0.0
    %999 = vmatpush1.xpose.msra.mxu0 0.0
    %1000 = vmatprep.mubr.f32.mxu0 0.0
    %1001 = vmatmul.mubr.f32.gmra.mrb[0].mxu0 %v931
    %v1002 = vpop.f32.mrb[0].mxu0
    %v1003 = vadd.f32 %v546, %v1002
    %v1004 = vpop.f32.mrb[0].mxu0
    %1005 = vdwg.mxu0
    %v1007 = vsel %vm549, %v434, 0
    %v1010 = vsel %vm549, %v531, 0
    %1012 = vmatprep.subr.mxu0 0.0
    %1013 = vmatpush1.xpose.msra.mxu0 %v1010
    %1014 = vmatprep.subr.mxu0 0.0
    %1015 = vmatpush1.xpose.msra.mxu0 0.0
    %1016 = vmatprep.subr.mxu0 0.0
    %1017 = vmatpush1.xpose.msra.mxu0 0.0
    %1018 = vmatprep.subr.mxu0 0.0
    %1019 = vmatpush1.xpose.msra.mxu0 0.0
    %1020 = vmatprep.subr.mxu0 0.0
    %1021 = vmatpush1.xpose.msra.mxu0 0.0
    %1022 = vmatprep.subr.mxu0 0.0
    %1023 = vmatpush1.xpose.msra.mxu0 0.0
    %1024 = vmatprep.subr.mxu0 0.0
    %1025 = vmatpush1.xpose.msra.mxu0 0.0
    %1026 = vmatprep.subr.mxu0 0.0
    %1027 = vmatpush1.xpose.msra.mxu0 0.0
    %1028 = vmatprep.subr.mxu0 0.0
    %1029 = vmatpush1.xpose.msra.mxu0 0.0
    %1030 = vmatprep.subr.mxu0 0.0
    %1031 = vmatpush1.xpose.msra.mxu0 0.0
    %1032 = vmatprep.subr.mxu0 0.0
    %1033 = vmatpush1.xpose.msra.mxu0 0.0
    %1034 = vmatprep.subr.mxu0 0.0
    %1035 = vmatpush1.xpose.msra.mxu0 0.0
    %1036 = vmatprep.subr.mxu0 0.0
    %1037 = vmatpush1.xpose.msra.mxu0 0.0
    %1038 = vmatprep.subr.mxu0 0.0
    %1039 = vmatpush1.xpose.msra.mxu0 0.0
    %1040 = vmatprep.subr.mxu0 0.0
    %1041 = vmatpush1.xpose.msra.mxu0 0.0
    %1042 = vmatprep.subr.mxu0 0.0
    %1043 = vmatpush1.xpose.msra.mxu0 0.0
    %1044 = vmatprep.subr.mxu0 0.0
    %1045 = vmatpush1.xpose.msra.mxu0 0.0
    %1046 = vmatprep.subr.mxu0 0.0
    %1047 = vmatpush1.xpose.msra.mxu0 0.0
    %1048 = vmatprep.subr.mxu0 0.0
    %1049 = vmatpush1.xpose.msra.mxu0 0.0
    %1050 = vmatprep.subr.mxu0 0.0
    %1051 = vmatpush1.xpose.msra.mxu0 0.0
    %1052 = vmatprep.subr.mxu0 0.0
    %1053 = vmatpush1.xpose.msra.mxu0 0.0
    %1054 = vmatprep.subr.mxu0 0.0
    %1055 = vmatpush1.xpose.msra.mxu0 0.0
    %1056 = vmatprep.subr.mxu0 0.0
    %1057 = vmatpush1.xpose.msra.mxu0 0.0
    %1058 = vmatprep.subr.mxu0 0.0
    %1059 = vmatpush1.xpose.msra.mxu0 0.0
    %1060 = vmatprep.subr.mxu0 0.0
    %1061 = vmatpush1.xpose.msra.mxu0 0.0
    %1062 = vmatprep.subr.mxu0 0.0
    %1063 = vmatpush1.xpose.msra.mxu0 0.0
    %1064 = vmatprep.subr.mxu0 0.0
    %1065 = vmatpush1.xpose.msra.mxu0 0.0
    %1066 = vmatprep.subr.mxu0 0.0
    %1067 = vmatpush1.xpose.msra.mxu0 0.0
    %1068 = vmatprep.subr.mxu0 0.0
    %1069 = vmatpush1.xpose.msra.mxu0 0.0
    %1070 = vmatprep.subr.mxu0 0.0
    %1071 = vmatpush1.xpose.msra.mxu0 0.0
    %1072 = vmatprep.subr.mxu0 0.0
    %1073 = vmatpush1.xpose.msra.mxu0 0.0
    %1074 = vmatprep.subr.mxu0 0.0
    %1075 = vmatpush1.xpose.msra.mxu0 0.0
    %1076 = vmatprep.mubr.f32.mxu0 0.0
    %1077 = vmatmul.mubr.f32.gmra.mrb[0].mxu0 %v1007
    %v1078 = vpop.f32.mrb[0].mxu0
    %v1079 = vadd.f32 %v547, %v1078
    %v1080 = vpop.f32.mrb[0].mxu0
    %1081 = vdwg.mxu0
    %v1083 = vsel %vm549, %v522, 0
    %v1086 = vsel %vm549, %v532, 0
    %1088 = vmatprep.subr.mxu0 0.0
    %1089 = vmatpush1.xpose.msra.mxu0 %v1086
    %1090 = vmatprep.subr.mxu0 0.0
    %1091 = vmatpush1.xpose.msra.mxu0 0.0
    %1092 = vmatprep.subr.mxu0 0.0
    %1093 = vmatpush1.xpose.msra.mxu0 0.0
    %1094 = vmatprep.subr.mxu0 0.0
    %1095 = vmatpush1.xpose.msra.mxu0 0.0
    %1096 = vmatprep.subr.mxu0 0.0
    %1097 = vmatpush1.xpose.msra.mxu0 0.0
    %1098 = vmatprep.subr.mxu0 0.0
    %1099 = vmatpush1.xpose.msra.mxu0 0.0
    %1100 = vmatprep.subr.mxu0 0.0
    %1101 = vmatpush1.xpose.msra.mxu0 0.0
    %1102 = vmatprep.subr.mxu0 0.0
    %1103 = vmatpush1.xpose.msra.mxu0 0.0
    %1104 = vmatprep.subr.mxu0 0.0
    %1105 = vmatpush1.xpose.msra.mxu0 0.0
    %1106 = vmatprep.subr.mxu0 0.0
    %1107 = vmatpush1.xpose.msra.mxu0 0.0
    %1108 = vmatprep.subr.mxu0 0.0
    %1109 = vmatpush1.xpose.msra.mxu0 0.0
    %1110 = vmatprep.subr.mxu0 0.0
    %1111 = vmatpush1.xpose.msra.mxu0 0.0
    %1112 = vmatprep.subr.mxu0 0.0
    %1113 = vmatpush1.xpose.msra.mxu0 0.0
    %1114 = vmatprep.subr.mxu0 0.0
    %1115 = vmatpush1.xpose.msra.mxu0 0.0
    %1116 = vmatprep.subr.mxu0 0.0
    %1117 = vmatpush1.xpose.msra.mxu0 0.0
    %1118 = vmatprep.subr.mxu0 0.0
    %1119 = vmatpush1.xpose.msra.mxu0 0.0
    %1120 = vmatprep.subr.mxu0 0.0
    %1121 = vmatpush1.xpose.msra.mxu0 0.0
    %1122 = vmatprep.subr.mxu0 0.0
    %1123 = vmatpush1.xpose.msra.mxu0 0.0
    %1124 = vmatprep.subr.mxu0 0.0
    %1125 = vmatpush1.xpose.msra.mxu0 0.0
    %1126 = vmatprep.subr.mxu0 0.0
    %1127 = vmatpush1.xpose.msra.mxu0 0.0
    %1128 = vmatprep.subr.mxu0 0.0
    %1129 = vmatpush1.xpose.msra.mxu0 0.0
    %1130 = vmatprep.subr.mxu0 0.0
    %1131 = vmatpush1.xpose.msra.mxu0 0.0
    %1132 = vmatprep.subr.mxu0 0.0
    %1133 = vmatpush1.xpose.msra.mxu0 0.0
    %1134 = vmatprep.subr.mxu0 0.0
    %1135 = vmatpush1.xpose.msra.mxu0 0.0
    %1136 = vmatprep.subr.mxu0 0.0
    %1137 = vmatpush1.xpose.msra.mxu0 0.0
    %1138 = vmatprep.subr.mxu0 0.0
    %1139 = vmatpush1.xpose.msra.mxu0 0.0
    %1140 = vmatprep.subr.mxu0 0.0
    %1141 = vmatpush1.xpose.msra.mxu0 0.0
    %1142 = vmatprep.subr.mxu0 0.0
    %1143 = vmatpush1.xpose.msra.mxu0 0.0
    %1144 = vmatprep.subr.mxu0 0.0
    %1145 = vmatpush1.xpose.msra.mxu0 0.0
    %1146 = vmatprep.subr.mxu0 0.0
    %1147 = vmatpush1.xpose.msra.mxu0 0.0
    %1148 = vmatprep.subr.mxu0 0.0
    %1149 = vmatpush1.xpose.msra.mxu0 0.0
    %1150 = vmatprep.subr.mxu0 0.0
    %1151 = vmatpush1.xpose.msra.mxu0 0.0
    %1152 = vmatprep.mubr.f32.mxu0 0.0
    %1153 = vmatmul.mubr.f32.gmra.mrb[0].mxu0 %v1083
    %v1154 = vpop.f32.mrb[0].mxu0
    %v1155 = vadd.f32 %v548, %v1154
    %v1156 = vpop.f32.mrb[0].mxu0
    %1157 = vdwg.mxu0
    %v1158 = vsel %vm549, %v623, -inf
    %1159 = vmax.xlane.f32.xlu0 %v1158
    %v1160 = vpop.xlane.xlu0 %1159
    %v1161 = vsel %vm549, %v699, -inf
    %1162 = vmax.xlane.f32.xlu0 %v1161
    %v1163 = vpop.xlane.xlu0 %1162
    %v1164 = vsel %vm549, %v775, -inf
    %1165 = vmax.xlane.f32.xlu0 %v1164
    %v1166 = vpop.xlane.xlu0 %1165
    %v1167 = vsel %vm549, %v851, -inf
    %1168 = vmax.xlane.f32.xlu0 %v1167
    %v1169 = vpop.xlane.xlu0 %1168
    %v1170 = vsel %vm549, %v927, -inf
    %1171 = vmax.xlane.f32.xlu0 %v1170
    %v1172 = vpop.xlane.xlu0 %1171
    %v1173 = vsel %vm549, %v1003, -inf
    %1174 = vmax.xlane.f32.xlu0 %v1173
    %v1175 = vpop.xlane.xlu0 %1174
    %v1176 = vsel %vm549, %v1079, -inf
    %1177 = vmax.xlane.f32.xlu0 %v1176
    %v1178 = vpop.xlane.xlu0 %1177
    %v1179 = vsel %vm549, %v1155, -inf
    %1180 = vmax.xlane.f32.xlu0 %v1179
    %v1181 = vpop.xlane.xlu0 %1180
    %v1182 = vsub.f32 %v623, %v1160
    %v1183 = vsub.f32 %v699, %v1163
    %v1184 = vsub.f32 %v775, %v1166
    %v1185 = vsub.f32 %v851, %v1169
    %v1186 = vsub.f32 %v927, %v1172
    %v1187 = vsub.f32 %v1003, %v1175
    %v1188 = vsub.f32 %v1079, %v1178
    %v1189 = vsub.f32 %v1155, %v1181
    %v1190 = vmul.f32 %v1182, 1.442695
    %v1191 = vpow.pop %v1190
    %v1192 = vmul.f32 %v1183, 1.442695
    %v1193 = vpow.pop %v1192
    %v1194 = vmul.f32 %v1184, 1.442695
    %v1195 = vpow.pop %v1194
    %v1196 = vmul.f32 %v1185, 1.442695
    %v1197 = vpow.pop %v1196
    %v1198 = vmul.f32 %v1186, 1.442695
    %v1199 = vpow.pop %v1198
    %v1200 = vmul.f32 %v1187, 1.442695
    %v1201 = vpow.pop %v1200
    %v1202 = vmul.f32 %v1188, 1.442695
    %v1203 = vpow.pop %v1202
    %v1204 = vmul.f32 %v1189, 1.442695
    %v1205 = vpow.pop %v1204
    %v1206 = vsel %vm549, %v1191, 0.0
    %1207 = vadd.xlane.f32.xlu0 %v1206
    %v1208 = vpop.xlane.xlu0 %1207
    %v1209 = vsel %vm549, %v1193, 0.0
    %1210 = vadd.xlane.f32.xlu0 %v1209
    %v1211 = vpop.xlane.xlu0 %1210
    %v1212 = vsel %vm549, %v1195, 0.0
    %1213 = vadd.xlane.f32.xlu0 %v1212
    %v1214 = vpop.xlane.xlu0 %1213
    %v1215 = vsel %vm549, %v1197, 0.0
    %1216 = vadd.xlane.f32.xlu0 %v1215
    %v1217 = vpop.xlane.xlu0 %1216
    %v1218 = vsel %vm549, %v1199, 0.0
    %1219 = vadd.xlane.f32.xlu0 %v1218
    %v1220 = vpop.xlane.xlu0 %1219
    %v1221 = vsel %vm549, %v1201, 0.0
    %1222 = vadd.xlane.f32.xlu0 %v1221
    %v1223 = vpop.xlane.xlu0 %1222
    %v1224 = vsel %vm549, %v1203, 0.0
    %1225 = vadd.xlane.f32.xlu0 %v1224
    %v1226 = vpop.xlane.xlu0 %1225
    %v1227 = vsel %vm549, %v1205, 0.0
    %1228 = vadd.xlane.f32.xlu0 %v1227
    %v1229 = vpop.xlane.xlu0 %1228
    %v1230 = vrcp.pop %v1208
    %v1231 = vmul.f32 %v1191, %v1230
    %v1232 = vrcp.pop %v1211
    %v1233 = vmul.f32 %v1193, %v1232
    %v1234 = vrcp.pop %v1214
    %v1235 = vmul.f32 %v1195, %v1234
    %v1236 = vrcp.pop %v1217
    %v1237 = vmul.f32 %v1197, %v1236
    %v1238 = vrcp.pop %v1220
    %v1239 = vmul.f32 %v1199, %v1238
    %v1240 = vrcp.pop %v1223
    %v1241 = vmul.f32 %v1201, %v1240
    %v1242 = vrcp.pop %v1226
    %v1243 = vmul.f32 %v1203, %v1242
    %v1244 = vrcp.pop %v1229
    %v1245 = vmul.f32 %v1205, %v1244
    %v1247 = vsel %vm549, %v1231, 0
    %1249 = vmatprep.subr.mxu0 0.0
    %1250 = vmatpush1.msra.mxu0 %v533
    %1251 = vmatprep.subr.mxu0 0.0
    %1252 = vmatpush1.msra.mxu0 0.0
    %1253 = vmatprep.subr.mxu0 0.0
    %1254 = vmatpush1.msra.mxu0 0.0
    %1255 = vmatprep.subr.mxu0 0.0
    %1256 = vmatpush1.msra.mxu0 0.0
    %1257 = vmatprep.subr.mxu0 0.0
    %1258 = vmatpush1.msra.mxu0 0.0
    %1259 = vmatprep.subr.mxu0 0.0
    %1260 = vmatpush1.msra.mxu0 0.0
    %1261 = vmatprep.subr.mxu0 0.0
    %1262 = vmatpush1.msra.mxu0 0.0
    %1263 = vmatprep.subr.mxu0 0.0
    %1264 = vmatpush1.msra.mxu0 0.0
    %1265 = vmatprep.subr.mxu0 0.0
    %1266 = vmatpush1.msra.mxu0 0.0
    %1267 = vmatprep.subr.mxu0 0.0
    %1268 = vmatpush1.msra.mxu0 0.0
    %1269 = vmatprep.subr.mxu0 0.0
    %1270 = vmatpush1.msra.mxu0 0.0
    %1271 = vmatprep.subr.mxu0 0.0
    %1272 = vmatpush1.msra.mxu0 0.0
    %1273 = vmatprep.subr.mxu0 0.0
    %1274 = vmatpush1.msra.mxu0 0.0
    %1275 = vmatprep.subr.mxu0 0.0
    %1276 = vmatpush1.msra.mxu0 0.0
    %1277 = vmatprep.subr.mxu0 0.0
    %1278 = vmatpush1.msra.mxu0 0.0
    %1279 = vmatprep.subr.mxu0 0.0
    %1280 = vmatpush1.msra.mxu0 0.0
    %1281 = vmatprep.subr.mxu0 0.0
    %1282 = vmatpush1.msra.mxu0 0.0
    %1283 = vmatprep.subr.mxu0 0.0
    %1284 = vmatpush1.msra.mxu0 0.0
    %1285 = vmatprep.subr.mxu0 0.0
    %1286 = vmatpush1.msra.mxu0 0.0
    %1287 = vmatprep.subr.mxu0 0.0
    %1288 = vmatpush1.msra.mxu0 0.0
    %1289 = vmatprep.subr.mxu0 0.0
    %1290 = vmatpush1.msra.mxu0 0.0
    %1291 = vmatprep.subr.mxu0 0.0
    %1292 = vmatpush1.msra.mxu0 0.0
    %1293 = vmatprep.subr.mxu0 0.0
    %1294 = vmatpush1.msra.mxu0 0.0
    %1295 = vmatprep.subr.mxu0 0.0
    %1296 = vmatpush1.msra.mxu0 0.0
    %1297 = vmatprep.subr.mxu0 0.0
    %1298 = vmatpush1.msra.mxu0 0.0
    %1299 = vmatprep.subr.mxu0 0.0
    %1300 = vmatpush1.msra.mxu0 0.0
    %1301 = vmatprep.subr.mxu0 0.0
    %1302 = vmatpush1.msra.mxu0 0.0
    %1303 = vmatprep.subr.mxu0 0.0
    %1304 = vmatpush1.msra.mxu0 0.0
    %1305 = vmatprep.subr.mxu0 0.0
    %1306 = vmatpush1.msra.mxu0 0.0
    %1307 = vmatprep.subr.mxu0 0.0
    %1308 = vmatpush1.msra.mxu0 0.0
    %1309 = vmatprep.subr.mxu0 0.0
    %1310 = vmatpush1.msra.mxu0 0.0
    %1311 = vmatprep.subr.mxu0 0.0
    %1312 = vmatpush1.msra.mxu0 0.0
    %1313 = vmatprep.mubr.f32.mxu0 0.0
    %1314 = vmatmul.mubr.f32.gmra.mrb[0].mxu0 %v1247
    %v1315 = vpop.f32.mrb[0].mxu0
    %v1316 = vadd.f32 0.0, %v1315
    %v1317 = vpop.f32.mrb[0].mxu0
    %1318 = vdwg.mxu0
    %v1320 = vsel %vm549, %v1233, 0
    %1322 = vmatprep.subr.mxu0 0.0
    %1323 = vmatpush1.msra.mxu0 %v534
    %1324 = vmatprep.subr.mxu0 0.0
    %1325 = vmatpush1.msra.mxu0 0.0
    %1326 = vmatprep.subr.mxu0 0.0
    %1327 = vmatpush1.msra.mxu0 0.0
    %1328 = vmatprep.subr.mxu0 0.0
    %1329 = vmatpush1.msra.mxu0 0.0
    %1330 = vmatprep.subr.mxu0 0.0
    %1331 = vmatpush1.msra.mxu0 0.0
    %1332 = vmatprep.subr.mxu0 0.0
    %1333 = vmatpush1.msra.mxu0 0.0
    %1334 = vmatprep.subr.mxu0 0.0
    %1335 = vmatpush1.msra.mxu0 0.0
    %1336 = vmatprep.subr.mxu0 0.0
    %1337 = vmatpush1.msra.mxu0 0.0
    %1338 = vmatprep.subr.mxu0 0.0
    %1339 = vmatpush1.msra.mxu0 0.0
    %1340 = vmatprep.subr.mxu0 0.0
    %1341 = vmatpush1.msra.mxu0 0.0
    %1342 = vmatprep.subr.mxu0 0.0
    %1343 = vmatpush1.msra.mxu0 0.0
    %1344 = vmatprep.subr.mxu0 0.0
    %1345 = vmatpush1.msra.mxu0 0.0
    %1346 = vmatprep.subr.mxu0 0.0
    %1347 = vmatpush1.msra.mxu0 0.0
    %1348 = vmatprep.subr.mxu0 0.0
    %1349 = vmatpush1.msra.mxu0 0.0
    %1350 = vmatprep.subr.mxu0 0.0
    %1351 = vmatpush1.msra.mxu0 0.0
    %1352 = vmatprep.subr.mxu0 0.0
    %1353 = vmatpush1.msra.mxu0 0.0
    %1354 = vmatprep.subr.mxu0 0.0
    %1355 = vmatpush1.msra.mxu0 0.0
    %1356 = vmatprep.subr.mxu0 0.0
    %1357 = vmatpush1.msra.mxu0 0.0
    %1358 = vmatprep.subr.mxu0 0.0
    %1359 = vmatpush1.msra.mxu0 0.0
    %1360 = vmatprep.subr.mxu0 0.0
    %1361 = vmatpush1.msra.mxu0 0.0
    %1362 = vmatprep.subr.mxu0 0.0
    %1363 = vmatpush1.msra.mxu0 0.0
    %1364 = vmatprep.subr.mxu0 0.0
    %1365 = vmatpush1.msra.mxu0 0.0
    %1366 = vmatprep.subr.mxu0 0.0
    %1367 = vmatpush1.msra.mxu0 0.0
    %1368 = vmatprep.subr.mxu0 0.0
    %1369 = vmatpush1.msra.mxu0 0.0
    %1370 = vmatprep.subr.mxu0 0.0
    %1371 = vmatpush1.msra.mxu0 0.0
    %1372 = vmatprep.subr.mxu0 0.0
    %1373 = vmatpush1.msra.mxu0 0.0
    %1374 = vmatprep.subr.mxu0 0.0
    %1375 = vmatpush1.msra.mxu0 0.0
    %1376 = vmatprep.subr.mxu0 0.0
    %1377 = vmatpush1.msra.mxu0 0.0
    %1378 = vmatprep.subr.mxu0 0.0
    %1379 = vmatpush1.msra.mxu0 0.0
    %1380 = vmatprep.subr.mxu0 0.0
    %1381 = vmatpush1.msra.mxu0 0.0
    %1382 = vmatprep.subr.mxu0 0.0
    %1383 = vmatpush1.msra.mxu0 0.0
    %1384 = vmatprep.subr.mxu0 0.0
    %1385 = vmatpush1.msra.mxu0 0.0
    %1386 = vmatprep.mubr.f32.mxu0 0.0
    %1387 = vmatmul.mubr.f32.gmra.mrb[0].mxu0 %v1320
    %v1388 = vpop.f32.mrb[0].mxu0
    %v1389 = vadd.f32 0.0, %v1388
    %v1390 = vpop.f32.mrb[0].mxu0
    %1391 = vdwg.mxu0
    %v1393 = vsel %vm549, %v1235, 0
    %1395 = vmatprep.subr.mxu0 0.0
    %1396 = vmatpush1.msra.mxu0 %v535
    %1397 = vmatprep.subr.mxu0 0.0
    %1398 = vmatpush1.msra.mxu0 0.0
    %1399 = vmatprep.subr.mxu0 0.0
    %1400 = vmatpush1.msra.mxu0 0.0
    %1401 = vmatprep.subr.mxu0 0.0
    %1402 = vmatpush1.msra.mxu0 0.0
    %1403 = vmatprep.subr.mxu0 0.0
    %1404 = vmatpush1.msra.mxu0 0.0
    %1405 = vmatprep.subr.mxu0 0.0
    %1406 = vmatpush1.msra.mxu0 0.0
    %1407 = vmatprep.subr.mxu0 0.0
    %1408 = vmatpush1.msra.mxu0 0.0
    %1409 = vmatprep.subr.mxu0 0.0
    %1410 = vmatpush1.msra.mxu0 0.0
    %1411 = vmatprep.subr.mxu0 0.0
    %1412 = vmatpush1.msra.mxu0 0.0
    %1413 = vmatprep.subr.mxu0 0.0
    %1414 = vmatpush1.msra.mxu0 0.0
    %1415 = vmatprep.subr.mxu0 0.0
    %1416 = vmatpush1.msra.mxu0 0.0
    %1417 = vmatprep.subr.mxu0 0.0
    %1418 = vmatpush1.msra.mxu0 0.0
    %1419 = vmatprep.subr.mxu0 0.0
    %1420 = vmatpush1.msra.mxu0 0.0
    %1421 = vmatprep.subr.mxu0 0.0
    %1422 = vmatpush1.msra.mxu0 0.0
    %1423 = vmatprep.subr.mxu0 0.0
    %1424 = vmatpush1.msra.mxu0 0.0
    %1425 = vmatprep.subr.mxu0 0.0
    %1426 = vmatpush1.msra.mxu0 0.0
    %1427 = vmatprep.subr.mxu0 0.0
    %1428 = vmatpush1.msra.mxu0 0.0
    %1429 = vmatprep.subr.mxu0 0.0
    %1430 = vmatpush1.msra.mxu0 0.0
    %1431 = vmatprep.subr.mxu0 0.0
    %1432 = vmatpush1.msra.mxu0 0.0
    %1433 = vmatprep.subr.mxu0 0.0
    %1434 = vmatpush1.msra.mxu0 0.0
    %1435 = vmatprep.subr.mxu0 0.0
    %1436 = vmatpush1.msra.mxu0 0.0
    %1437 = vmatprep.subr.mxu0 0.0
    %1438 = vmatpush1.msra.mxu0 0.0
    %1439 = vmatprep.subr.mxu0 0.0
    %1440 = vmatpush1.msra.mxu0 0.0
    %1441 = vmatprep.subr.mxu0 0.0
    %1442 = vmatpush1.msra.mxu0 0.0
    %1443 = vmatprep.subr.mxu0 0.0
    %1444 = vmatpush1.msra.mxu0 0.0
    %1445 = vmatprep.subr.mxu0 0.0
    %1446 = vmatpush1.msra.mxu0 0.0
    %1447 = vmatprep.subr.mxu0 0.0
    %1448 = vmatpush1.msra.mxu0 0.0
    %1449 = vmatprep.subr.mxu0 0.0
    %1450 = vmatpush1.msra.mxu0 0.0
    %1451 = vmatprep.subr.mxu0 0.0
    %1452 = vmatpush1.msra.mxu0 0.0
    %1453 = vmatprep.subr.mxu0 0.0
    %1454 = vmatpush1.msra.mxu0 0.0
    %1455 = vmatprep.subr.mxu0 0.0
    %1456 = vmatpush1.msra.mxu0 0.0
    %1457 = vmatprep.subr.mxu0 0.0
    %1458 = vmatpush1.msra.mxu0 0.0
    %1459 = vmatprep.mubr.f32.mxu0 0.0
    %1460 = vmatmul.mubr.f32.gmra.mrb[0].mxu0 %v1393
    %v1461 = vpop.f32.mrb[0].mxu0
    %v1462 = vadd.f32 0.0, %v1461
    %v1463 = vpop.f32.mrb[0].mxu0
    %1464 = vdwg.mxu0
    %v1466 = vsel %vm549, %v1237, 0
    %1468 = vmatprep.subr.mxu0 0.0
    %1469 = vmatpush1.msra.mxu0 %v536
    %1470 = vmatprep.subr.mxu0 0.0
    %1471 = vmatpush1.msra.mxu0 0.0
    %1472 = vmatprep.subr.mxu0 0.0
    %1473 = vmatpush1.msra.mxu0 0.0
    %1474 = vmatprep.subr.mxu0 0.0
    %1475 = vmatpush1.msra.mxu0 0.0
    %1476 = vmatprep.subr.mxu0 0.0
    %1477 = vmatpush1.msra.mxu0 0.0
    %1478 = vmatprep.subr.mxu0 0.0
    %1479 = vmatpush1.msra.mxu0 0.0
    %1480 = vmatprep.subr.mxu0 0.0
    %1481 = vmatpush1.msra.mxu0 0.0
    %1482 = vmatprep.subr.mxu0 0.0
    %1483 = vmatpush1.msra.mxu0 0.0
    %1484 = vmatprep.subr.mxu0 0.0
    %1485 = vmatpush1.msra.mxu0 0.0
    %1486 = vmatprep.subr.mxu0 0.0
    %1487 = vmatpush1.msra.mxu0 0.0
    %1488 = vmatprep.subr.mxu0 0.0
    %1489 = vmatpush1.msra.mxu0 0.0
    %1490 = vmatprep.subr.mxu0 0.0
    %1491 = vmatpush1.msra.mxu0 0.0
    %1492 = vmatprep.subr.mxu0 0.0
    %1493 = vmatpush1.msra.mxu0 0.0
    %1494 = vmatprep.subr.mxu0 0.0
    %1495 = vmatpush1.msra.mxu0 0.0
    %1496 = vmatprep.subr.mxu0 0.0
    %1497 = vmatpush1.msra.mxu0 0.0
    %1498 = vmatprep.subr.mxu0 0.0
    %1499 = vmatpush1.msra.mxu0 0.0
    %1500 = vmatprep.subr.mxu0 0.0
    %1501 = vmatpush1.msra.mxu0 0.0
    %1502 = vmatprep.subr.mxu0 0.0
    %1503 = vmatpush1.msra.mxu0 0.0
    %1504 = vmatprep.subr.mxu0 0.0
    %1505 = vmatpush1.msra.mxu0 0.0
    %1506 = vmatprep.subr.mxu0 0.0
    %1507 = vmatpush1.msra.mxu0 0.0
    %1508 = vmatprep.subr.mxu0 0.0
    %1509 = vmatpush1.msra.mxu0 0.0
    %1510 = vmatprep.subr.mxu0 0.0
    %1511 = vmatpush1.msra.mxu0 0.0
    %1512 = vmatprep.subr.mxu0 0.0
    %1513 = vmatpush1.msra.mxu0 0.0
    %1514 = vmatprep.subr.mxu0 0.0
    %1515 = vmatpush1.msra.mxu0 0.0
    %1516 = vmatprep.subr.mxu0 0.0
    %1517 = vmatpush1.msra.mxu0 0.0
    %1518 = vmatprep.subr.mxu0 0.0
    %1519 = vmatpush1.msra.mxu0 0.0
    %1520 = vmatprep.subr.mxu0 0.0
    %1521 = vmatpush1.msra.mxu0 0.0
    %1522 = vmatprep.subr.mxu0 0.0
    %1523 = vmatpush1.msra.mxu0 0.0
    %1524 = vmatprep.subr.mxu0 0.0
    %1525 = vmatpush1.msra.mxu0 0.0
    %1526 = vmatprep.subr.mxu0 0.0
    %1527 = vmatpush1.msra.mxu0 0.0
    %1528 = vmatprep.subr.mxu0 0.0
    %1529 = vmatpush1.msra.mxu0 0.0
    %1530 = vmatprep.subr.mxu0 0.0
    %1531 = vmatpush1.msra.mxu0 0.0
    %1532 = vmatprep.mubr.f32.mxu0 0.0
    %1533 = vmatmul.mubr.f32.gmra.mrb[0].mxu0 %v1466
    %v1534 = vpop.f32.mrb[0].mxu0
    %v1535 = vadd.f32 0.0, %v1534
    %v1536 = vpop.f32.mrb[0].mxu0
    %1537 = vdwg.mxu0
    %v1539 = vsel %vm549, %v1239, 0
    %1541 = vmatprep.subr.mxu0 0.0
    %1542 = vmatpush1.msra.mxu0 %v537
    %1543 = vmatprep.subr.mxu0 0.0
    %1544 = vmatpush1.msra.mxu0 0.0
    %1545 = vmatprep.subr.mxu0 0.0
    %1546 = vmatpush1.msra.mxu0 0.0
    %1547 = vmatprep.subr.mxu0 0.0
    %1548 = vmatpush1.msra.mxu0 0.0
    %1549 = vmatprep.subr.mxu0 0.0
    %1550 = vmatpush1.msra.mxu0 0.0
    %1551 = vmatprep.subr.mxu0 0.0
    %1552 = vmatpush1.msra.mxu0 0.0
    %1553 = vmatprep.subr.mxu0 0.0
    %1554 = vmatpush1.msra.mxu0 0.0
    %1555 = vmatprep.subr.mxu0 0.0
    %1556 = vmatpush1.msra.mxu0 0.0
    %1557 = vmatprep.subr.mxu0 0.0
    %1558 = vmatpush1.msra.mxu0 0.0
    %1559 = vmatprep.subr.mxu0 0.0
    %1560 = vmatpush1.msra.mxu0 0.0
    %1561 = vmatprep.subr.mxu0 0.0
    %1562 = vmatpush1.msra.mxu0 0.0
    %1563 = vmatprep.subr.mxu0 0.0
    %1564 = vmatpush1.msra.mxu0 0.0
    %1565 = vmatprep.subr.mxu0 0.0
    %1566 = vmatpush1.msra.mxu0 0.0
    %1567 = vmatprep.subr.mxu0 0.0
    %1568 = vmatpush1.msra.mxu0 0.0
    %1569 = vmatprep.subr.mxu0 0.0
    %1570 = vmatpush1.msra.mxu0 0.0
    %1571 = vmatprep.subr.mxu0 0.0
    %1572 = vmatpush1.msra.mxu0 0.0
    %1573 = vmatprep.subr.mxu0 0.0
    %1574 = vmatpush1.msra.mxu0 0.0
    %1575 = vmatprep.subr.mxu0 0.0
    %1576 = vmatpush1.msra.mxu0 0.0
    %1577 = vmatprep.subr.mxu0 0.0
    %1578 = vmatpush1.msra.mxu0 0.0
    %1579 = vmatprep.subr.mxu0 0.0
    %1580 = vmatpush1.msra.mxu0 0.0
    %1581 = vmatprep.subr.mxu0 0.0
    %1582 = vmatpush1.msra.mxu0 0.0
    %1583 = vmatprep.subr.mxu0 0.0
    %1584 = vmatpush1.msra.mxu0 0.0
    %1585 = vmatprep.subr.mxu0 0.0
    %1586 = vmatpush1.msra.mxu0 0.0
    %1587 = vmatprep.subr.mxu0 0.0
    %1588 = vmatpush1.msra.mxu0 0.0
    %1589 = vmatprep.subr.mxu0 0.0
    %1590 = vmatpush1.msra.mxu0 0.0
    %1591 = vmatprep.subr.mxu0 0.0
    %1592 = vmatpush1.msra.mxu0 0.0
    %1593 = vmatprep.subr.mxu0 0.0
    %1594 = vmatpush1.msra.mxu0 0.0
    %1595 = vmatprep.subr.mxu0 0.0
    %1596 = vmatpush1.msra.mxu0 0.0
    %1597 = vmatprep.subr.mxu0 0.0
    %1598 = vmatpush1.msra.mxu0 0.0
    %1599 = vmatprep.subr.mxu0 0.0
    %1600 = vmatpush1.msra.mxu0 0.0
    %1601 = vmatprep.subr.mxu0 0.0
    %1602 = vmatpush1.msra.mxu0 0.0
    %1603 = vmatprep.subr.mxu0 0.0
    %1604 = vmatpush1.msra.mxu0 0.0
    %1605 = vmatprep.mubr.f32.mxu0 0.0
    %1606 = vmatmul.mubr.f32.gmra.mrb[0].mxu0 %v1539
    %v1607 = vpop.f32.mrb[0].mxu0
    %v1608 = vadd.f32 0.0, %v1607
    %v1609 = vpop.f32.mrb[0].mxu0
    %1610 = vdwg.mxu0
    %v1612 = vsel %vm549, %v1241, 0
    %1614 = vmatprep.subr.mxu0 0.0
    %1615 = vmatpush1.msra.mxu0 %v538
    %1616 = vmatprep.subr.mxu0 0.0
    %1617 = vmatpush1.msra.mxu0 0.0
    %1618 = vmatprep.subr.mxu0 0.0
    %1619 = vmatpush1.msra.mxu0 0.0
    %1620 = vmatprep.subr.mxu0 0.0
    %1621 = vmatpush1.msra.mxu0 0.0
    %1622 = vmatprep.subr.mxu0 0.0
    %1623 = vmatpush1.msra.mxu0 0.0
    %1624 = vmatprep.subr.mxu0 0.0
    %1625 = vmatpush1.msra.mxu0 0.0
    %1626 = vmatprep.subr.mxu0 0.0
    %1627 = vmatpush1.msra.mxu0 0.0
    %1628 = vmatprep.subr.mxu0 0.0
    %1629 = vmatpush1.msra.mxu0 0.0
    %1630 = vmatprep.subr.mxu0 0.0
    %1631 = vmatpush1.msra.mxu0 0.0
    %1632 = vmatprep.subr.mxu0 0.0
    %1633 = vmatpush1.msra.mxu0 0.0
    %1634 = vmatprep.subr.mxu0 0.0
    %1635 = vmatpush1.msra.mxu0 0.0
    %1636 = vmatprep.subr.mxu0 0.0
    %1637 = vmatpush1.msra.mxu0 0.0
    %1638 = vmatprep.subr.mxu0 0.0
    %1639 = vmatpush1.msra.mxu0 0.0
    %1640 = vmatprep.subr.mxu0 0.0
    %1641 = vmatpush1.msra.mxu0 0.0
    %1642 = vmatprep.subr.mxu0 0.0
    %1643 = vmatpush1.msra.mxu0 0.0
    %1644 = vmatprep.subr.mxu0 0.0
    %1645 = vmatpush1.msra.mxu0 0.0
    %1646 = vmatprep.subr.mxu0 0.0
    %1647 = vmatpush1.msra.mxu0 0.0
    %1648 = vmatprep.subr.mxu0 0.0
    %1649 = vmatpush1.msra.mxu0 0.0
    %1650 = vmatprep.subr.mxu0 0.0
    %1651 = vmatpush1.msra.mxu0 0.0
    %1652 = vmatprep.subr.mxu0 0.0
    %1653 = vmatpush1.msra.mxu0 0.0
    %1654 = vmatprep.subr.mxu0 0.0
    %1655 = vmatpush1.msra.mxu0 0.0
    %1656 = vmatprep.subr.mxu0 0.0
    %1657 = vmatpush1.msra.mxu0 0.0
    %1658 = vmatprep.subr.mxu0 0.0
    %1659 = vmatpush1.msra.mxu0 0.0
    %1660 = vmatprep.subr.mxu0 0.0
    %1661 = vmatpush1.msra.mxu0 0.0
    %1662 = vmatprep.subr.mxu0 0.0
    %1663 = vmatpush1.msra.mxu0 0.0
    %1664 = vmatprep.subr.mxu0 0.0
    %1665 = vmatpush1.msra.mxu0 0.0
    %1666 = vmatprep.subr.mxu0 0.0
    %1667 = vmatpush1.msra.mxu0 0.0
    %1668 = vmatprep.subr.mxu0 0.0
    %1669 = vmatpush1.msra.mxu0 0.0
    %1670 = vmatprep.subr.mxu0 0.0
    %1671 = vmatpush1.msra.mxu0 0.0
    %1672 = vmatprep.subr.mxu0 0.0
    %1673 = vmatpush1.msra.mxu0 0.0
    %1674 = vmatprep.subr.mxu0 0.0
    %1675 = vmatpush1.msra.mxu0 0.0
    %1676 = vmatprep.subr.mxu0 0.0
    %1677 = vmatpush1.msra.mxu0 0.0
    %1678 = vmatprep.mubr.f32.mxu0 0.0
    %1679 = vmatmul.mubr.f32.gmra.mrb[0].mxu0 %v1612
    %v1680 = vpop.f32.mrb[0].mxu0
    %v1681 = vadd.f32 0.0, %v1680
    %v1682 = vpop.f32.mrb[0].mxu0
    %1683 = vdwg.mxu0
    %v1685 = vsel %vm549, %v1243, 0
    %1687 = vmatprep.subr.mxu0 0.0
    %1688 = vmatpush1.msra.mxu0 %v539
    %1689 = vmatprep.subr.mxu0 0.0
    %1690 = vmatpush1.msra.mxu0 0.0
    %1691 = vmatprep.subr.mxu0 0.0
    %1692 = vmatpush1.msra.mxu0 0.0
    %1693 = vmatprep.subr.mxu0 0.0
    %1694 = vmatpush1.msra.mxu0 0.0
    %1695 = vmatprep.subr.mxu0 0.0
    %1696 = vmatpush1.msra.mxu0 0.0
    %1697 = vmatprep.subr.mxu0 0.0
    %1698 = vmatpush1.msra.mxu0 0.0
    %1699 = vmatprep.subr.mxu0 0.0
    %1700 = vmatpush1.msra.mxu0 0.0
    %1701 = vmatprep.subr.mxu0 0.0
    %1702 = vmatpush1.msra.mxu0 0.0
    %1703 = vmatprep.subr.mxu0 0.0
    %1704 = vmatpush1.msra.mxu0 0.0
    %1705 = vmatprep.subr.mxu0 0.0
    %1706 = vmatpush1.msra.mxu0 0.0
    %1707 = vmatprep.subr.mxu0 0.0
    %1708 = vmatpush1.msra.mxu0 0.0
    %1709 = vmatprep.subr.mxu0 0.0
    %1710 = vmatpush1.msra.mxu0 0.0
    %1711 = vmatprep.subr.mxu0 0.0
    %1712 = vmatpush1.msra.mxu0 0.0
    %1713 = vmatprep.subr.mxu0 0.0
    %1714 = vmatpush1.msra.mxu0 0.0
    %1715 = vmatprep.subr.mxu0 0.0
    %1716 = vmatpush1.msra.mxu0 0.0
    %1717 = vmatprep.subr.mxu0 0.0
    %1718 = vmatpush1.msra.mxu0 0.0
    %1719 = vmatprep.subr.mxu0 0.0
    %1720 = vmatpush1.msra.mxu0 0.0
    %1721 = vmatprep.subr.mxu0 0.0
    %1722 = vmatpush1.msra.mxu0 0.0
    %1723 = vmatprep.subr.mxu0 0.0
    %1724 = vmatpush1.msra.mxu0 0.0
    %1725 = vmatprep.subr.mxu0 0.0
    %1726 = vmatpush1.msra.mxu0 0.0
    %1727 = vmatprep.subr.mxu0 0.0
    %1728 = vmatpush1.msra.mxu0 0.0
    %1729 = vmatprep.subr.mxu0 0.0
    %1730 = vmatpush1.msra.mxu0 0.0
    %1731 = vmatprep.subr.mxu0 0.0
    %1732 = vmatpush1.msra.mxu0 0.0
    %1733 = vmatprep.subr.mxu0 0.0
    %1734 = vmatpush1.msra.mxu0 0.0
    %1735 = vmatprep.subr.mxu0 0.0
    %1736 = vmatpush1.msra.mxu0 0.0
    %1737 = vmatprep.subr.mxu0 0.0
    %1738 = vmatpush1.msra.mxu0 0.0
    %1739 = vmatprep.subr.mxu0 0.0
    %1740 = vmatpush1.msra.mxu0 0.0
    %1741 = vmatprep.subr.mxu0 0.0
    %1742 = vmatpush1.msra.mxu0 0.0
    %1743 = vmatprep.subr.mxu0 0.0
    %1744 = vmatpush1.msra.mxu0 0.0
    %1745 = vmatprep.subr.mxu0 0.0
    %1746 = vmatpush1.msra.mxu0 0.0
    %1747 = vmatprep.subr.mxu0 0.0
    %1748 = vmatpush1.msra.mxu0 0.0
    %1749 = vmatprep.subr.mxu0 0.0
    %1750 = vmatpush1.msra.mxu0 0.0
    %1751 = vmatprep.mubr.f32.mxu0 0.0
    %1752 = vmatmul.mubr.f32.gmra.mrb[0].mxu0 %v1685
    %v1753 = vpop.f32.mrb[0].mxu0
    %v1754 = vadd.f32 0.0, %v1753
    %v1755 = vpop.f32.mrb[0].mxu0
    %1756 = vdwg.mxu0
    %v1758 = vsel %vm549, %v1245, 0
    %1760 = vmatprep.subr.mxu0 0.0
    %1761 = vmatpush1.msra.mxu0 %v540
    %1762 = vmatprep.subr.mxu0 0.0
    %1763 = vmatpush1.msra.mxu0 0.0
    %1764 = vmatprep.subr.mxu0 0.0
    %1765 = vmatpush1.msra.mxu0 0.0
    %1766 = vmatprep.subr.mxu0 0.0
    %1767 = vmatpush1.msra.mxu0 0.0
    %1768 = vmatprep.subr.mxu0 0.0
    %1769 = vmatpush1.msra.mxu0 0.0
    %1770 = vmatprep.subr.mxu0 0.0
    %1771 = vmatpush1.msra.mxu0 0.0
    %1772 = vmatprep.subr.mxu0 0.0
    %1773 = vmatpush1.msra.mxu0 0.0
    %1774 = vmatprep.subr.mxu0 0.0
    %1775 = vmatpush1.msra.mxu0 0.0
    %1776 = vmatprep.subr.mxu0 0.0
    %1777 = vmatpush1.msra.mxu0 0.0
    %1778 = vmatprep.subr.mxu0 0.0
    %1779 = vmatpush1.msra.mxu0 0.0
    %1780 = vmatprep.subr.mxu0 0.0
    %1781 = vmatpush1.msra.mxu0 0.0
    %1782 = vmatprep.subr.mxu0 0.0
    %1783 = vmatpush1.msra.mxu0 0.0
    %1784 = vmatprep.subr.mxu0 0.0
    %1785 = vmatpush1.msra.mxu0 0.0
    %1786 = vmatprep.subr.mxu0 0.0
    %1787 = vmatpush1.msra.mxu0 0.0
    %1788 = vmatprep.subr.mxu0 0.0
    %1789 = vmatpush1.msra.mxu0 0.0
    %1790 = vmatprep.subr.mxu0 0.0
    %1791 = vmatpush1.msra.mxu0 0.0
    %1792 = vmatprep.subr.mxu0 0.0
    %1793 = vmatpush1.msra.mxu0 0.0
    %1794 = vmatprep.subr.mxu0 0.0
    %1795 = vmatpush1.msra.mxu0 0.0
    %1796 = vmatprep.subr.mxu0 0.0
    %1797 = vmatpush1.msra.mxu0 0.0
    %1798 = vmatprep.subr.mxu0 0.0
    %1799 = vmatpush1.msra.mxu0 0.0
    %1800 = vmatprep.subr.mxu0 0.0
    %1801 = vmatpush1.msra.mxu0 0.0
    %1802 = vmatprep.subr.mxu0 0.0
    %1803 = vmatpush1.msra.mxu0 0.0
    %1804 = vmatprep.subr.mxu0 0.0
    %1805 = vmatpush1.msra.mxu0 0.0
    %1806 = vmatprep.subr.mxu0 0.0
    %1807 = vmatpush1.msra.mxu0 0.0
    %1808 = vmatprep.subr.mxu0 0.0
    %1809 = vmatpush1.msra.mxu0 0.0
    %1810 = vmatprep.subr.mxu0 0.0
    %1811 = vmatpush1.msra.mxu0 0.0
    %1812 = vmatprep.subr.mxu0 0.0
    %1813 = vmatpush1.msra.mxu0 0.0
    %1814 = vmatprep.subr.mxu0 0.0
    %1815 = vmatpush1.msra.mxu0 0.0
    %1816 = vmatprep.subr.mxu0 0.0
    %1817 = vmatpush1.msra.mxu0 0.0
    %1818 = vmatprep.subr.mxu0 0.0
    %1819 = vmatpush1.msra.mxu0 0.0
    %1820 = vmatprep.subr.mxu0 0.0
    %1821 = vmatpush1.msra.mxu0 0.0
    %1822 = vmatprep.subr.mxu0 0.0
    %1823 = vmatpush1.msra.mxu0 0.0
    %1824 = vmatprep.mubr.f32.mxu0 0.0
    %1825 = vmatmul.mubr.f32.gmra.mrb[0].mxu0 %v1758
    %v1826 = vpop.f32.mrb[0].mxu0
    %v1827 = vadd.f32 0.0, %v1826
    %v1828 = vpop.f32.mrb[0].mxu0
    %1829 = vdwg.mxu0
    %v1830 = vld [vmem:[#allocation13] sm:$0xff]
    %s1831 = scalar_lea.vmem [#allocation13], 8
    %v1832 = vld [vmem:[%s1831] sm:$0xff]
    %v1834 = vsel %vm549, %v1389, 0
    %v1837 = vsel %vm549, %v1681, 0
    %1839 = vmatprep.subr.mxu0 0.0
    %1840 = vmatpush1.msra.mxu0 %v1832
    %1841 = vmatprep.subr.mxu0 0.0
    %1842 = vmatpush1.msra.mxu0 0.0
    %1843 = vmatprep.subr.mxu0 0.0
    %1844 = vmatpush1.msra.mxu0 0.0
    %1845 = vmatprep.subr.mxu0 0.0
    %1846 = vmatpush1.msra.mxu0 0.0
    %1847 = vmatprep.subr.mxu0 0.0
    %1848 = vmatpush1.msra.mxu0 0.0
    %1849 = vmatprep.subr.mxu0 0.0
    %1850 = vmatpush1.msra.mxu0 0.0
    %1851 = vmatprep.subr.mxu0 0.0
    %1852 = vmatpush1.msra.mxu0 0.0
    %1853 = vmatprep.subr.mxu0 0.0
    %1854 = vmatpush1.msra.mxu0 0.0
    %1855 = vmatprep.subr.mxu0 0.0
    %1856 = vmatpush1.msra.mxu0 0.0
    %1857 = vmatprep.subr.mxu0 0.0
    %1858 = vmatpush1.msra.mxu0 0.0
    %1859 = vmatprep.subr.mxu0 0.0
    %1860 = vmatpush1.msra.mxu0 0.0
    %1861 = vmatprep.subr.mxu0 0.0
    %1862 = vmatpush1.msra.mxu0 0.0
    %1863 = vmatprep.subr.mxu0 0.0
    %1864 = vmatpush1.msra.mxu0 0.0
    %1865 = vmatprep.subr.mxu0 0.0
    %1866 = vmatpush1.msra.mxu0 0.0
    %1867 = vmatprep.subr.mxu0 0.0
    %1868 = vmatpush1.msra.mxu0 0.0
    %1869 = vmatprep.subr.mxu0 0.0
    %1870 = vmatpush1.msra.mxu0 0.0
    %1871 = vmatprep.subr.mxu0 0.0
    %1872 = vmatpush1.msra.mxu0 0.0
    %1873 = vmatprep.subr.mxu0 0.0
    %1874 = vmatpush1.msra.mxu0 0.0
    %1875 = vmatprep.subr.mxu0 0.0
    %1876 = vmatpush1.msra.mxu0 0.0
    %1877 = vmatprep.subr.mxu0 0.0
    %1878 = vmatpush1.msra.mxu0 0.0
    %1879 = vmatprep.subr.mxu0 0.0
    %1880 = vmatpush1.msra.mxu0 0.0
    %1881 = vmatprep.subr.mxu0 0.0
    %1882 = vmatpush1.msra.mxu0 0.0
    %1883 = vmatprep.subr.mxu0 0.0
    %1884 = vmatpush1.msra.mxu0 0.0
    %1885 = vmatprep.subr.mxu0 0.0
    %1886 = vmatpush1.msra.mxu0 0.0
    %1887 = vmatprep.subr.mxu0 0.0
    %1888 = vmatpush1.msra.mxu0 0.0
    %1889 = vmatprep.subr.mxu0 0.0
    %1890 = vmatpush1.msra.mxu0 0.0
    %1891 = vmatprep.subr.mxu0 0.0
    %1892 = vmatpush1.msra.mxu0 0.0
    %1893 = vmatprep.subr.mxu0 0.0
    %1894 = vmatpush1.msra.mxu0 0.0
    %1895 = vmatprep.subr.mxu0 0.0
    %1896 = vmatpush1.msra.mxu0 0.0
    %1897 = vmatprep.subr.mxu0 0.0
    %1898 = vmatpush1.msra.mxu0 0.0
    %1899 = vmatprep.subr.mxu0 0.0
    %1900 = vmatpush1.msra.mxu0 0.0
    %1901 = vmatprep.subr.mxu0 0.0
    %1902 = vmatpush1.msra.mxu0 0.0
    %1903 = vmatprep.mubr.f32.mxu0 0.0
    %1904 = vmatmul.mubr.f32.gmra.mrb[0].mxu0 %v1834
    %v1905 = vpop.f32.mrb[0].mxu0
    %v1906 = vadd.f32 0.0, %v1905
    %v1907 = vpop.f32.mrb[0].mxu0
    %1908 = vmatprep.mubr.f32.mxu0 0.0
    %1909 = vmatmul.mubr.f32.gmra.mrb[0].mxu0 %v1837
    %v1910 = vpop.f32.mrb[0].mxu0
    %v1911 = vadd.f32 0.0, %v1910
    %v1912 = vpop.f32.mrb[0].mxu0
    %1913 = vdwg.mxu0
    %v1915 = vsel %vm549, %v1316, 0
    %v1918 = vsel %vm549, %v1608, 0
    %1920 = vmatprep.subr.mxu0 0.0
    %1921 = vmatpush1.msra.mxu0 %v1830
    %1922 = vmatprep.subr.mxu0 0.0
    %1923 = vmatpush1.msra.mxu0 0.0
    %1924 = vmatprep.subr.mxu0 0.0
    %1925 = vmatpush1.msra.mxu0 0.0
    %1926 = vmatprep.subr.mxu0 0.0
    %1927 = vmatpush1.msra.mxu0 0.0
    %1928 = vmatprep.subr.mxu0 0.0
    %1929 = vmatpush1.msra.mxu0 0.0
    %1930 = vmatprep.subr.mxu0 0.0
    %1931 = vmatpush1.msra.mxu0 0.0
    %1932 = vmatprep.subr.mxu0 0.0
    %1933 = vmatpush1.msra.mxu0 0.0
    %1934 = vmatprep.subr.mxu0 0.0
    %1935 = vmatpush1.msra.mxu0 0.0
    %1936 = vmatprep.subr.mxu0 0.0
    %1937 = vmatpush1.msra.mxu0 0.0
    %1938 = vmatprep.subr.mxu0 0.0
    %1939 = vmatpush1.msra.mxu0 0.0
    %1940 = vmatprep.subr.mxu0 0.0
    %1941 = vmatpush1.msra.mxu0 0.0
    %1942 = vmatprep.subr.mxu0 0.0
    %1943 = vmatpush1.msra.mxu0 0.0
    %1944 = vmatprep.subr.mxu0 0.0
    %1945 = vmatpush1.msra.mxu0 0.0
    %1946 = vmatprep.subr.mxu0 0.0
    %1947 = vmatpush1.msra.mxu0 0.0
    %1948 = vmatprep.subr.mxu0 0.0
    %1949 = vmatpush1.msra.mxu0 0.0
    %1950 = vmatprep.subr.mxu0 0.0
    %1951 = vmatpush1.msra.mxu0 0.0
    %1952 = vmatprep.subr.mxu0 0.0
    %1953 = vmatpush1.msra.mxu0 0.0
    %1954 = vmatprep.subr.mxu0 0.0
    %1955 = vmatpush1.msra.mxu0 0.0
    %1956 = vmatprep.subr.mxu0 0.0
    %1957 = vmatpush1.msra.mxu0 0.0
    %1958 = vmatprep.subr.mxu0 0.0
    %1959 = vmatpush1.msra.mxu0 0.0
    %1960 = vmatprep.subr.mxu0 0.0
    %1961 = vmatpush1.msra.mxu0 0.0
    %1962 = vmatprep.subr.mxu0 0.0
    %1963 = vmatpush1.msra.mxu0 0.0
    %1964 = vmatprep.subr.mxu0 0.0
    %1965 = vmatpush1.msra.mxu0 0.0
    %1966 = vmatprep.subr.mxu0 0.0
    %1967 = vmatpush1.msra.mxu0 0.0
    %1968 = vmatprep.subr.mxu0 0.0
    %1969 = vmatpush1.msra.mxu0 0.0
    %1970 = vmatprep.subr.mxu0 0.0
    %1971 = vmatpush1.msra.mxu0 0.0
    %1972 = vmatprep.subr.mxu0 0.0
    %1973 = vmatpush1.msra.mxu0 0.0
    %1974 = vmatprep.subr.mxu0 0.0
    %1975 = vmatpush1.msra.mxu0 0.0
    %1976 = vmatprep.subr.mxu0 0.0
    %1977 = vmatpush1.msra.mxu0 0.0
    %1978 = vmatprep.subr.mxu0 0.0
    %1979 = vmatpush1.msra.mxu0 0.0
    %1980 = vmatprep.subr.mxu0 0.0
    %1981 = vmatpush1.msra.mxu0 0.0
    %1982 = vmatprep.subr.mxu0 0.0
    %1983 = vmatpush1.msra.mxu0 0.0
    %1984 = vmatprep.mubr.f32.mxu0 0.0
    %1985 = vmatmul.mubr.f32.gmra.mrb[0].mxu0 %v1915
    %v1986 = vpop.f32.mrb[0].mxu0
    %v1987 = vadd.f32 %v1906, %v1986
    %v1988 = vpop.f32.mrb[0].mxu0
    %1989 = vmatprep.mubr.f32.mxu0 0.0
    %1990 = vmatmul.mubr.f32.gmra.mrb[0].mxu0 %v1918
    %v1991 = vpop.f32.mrb[0].mxu0
    %v1992 = vadd.f32 %v1911, %v1991
    %v1993 = vpop.f32.mrb[0].mxu0
    %1994 = vdwg.mxu0
    %s1995 = scalar_lea.vmem [#allocation13], 16
    %v1996 = vld [vmem:[%s1995] sm:$0xff]
    %v1998 = vsel %vm549, %v1462, 0
    %v2001 = vsel %vm549, %v1754, 0
    %2003 = vmatprep.subr.mxu0 0.0
    %2004 = vmatpush1.msra.mxu0 %v1996
    %2005 = vmatprep.subr.mxu0 0.0
    %2006 = vmatpush1.msra.mxu0 0.0
    %2007 = vmatprep.subr.mxu0 0.0
    %2008 = vmatpush1.msra.mxu0 0.0
    %2009 = vmatprep.subr.mxu0 0.0
    %2010 = vmatpush1.msra.mxu0 0.0
    %2011 = vmatprep.subr.mxu0 0.0
    %2012 = vmatpush1.msra.mxu0 0.0
    %2013 = vmatprep.subr.mxu0 0.0
    %2014 = vmatpush1.msra.mxu0 0.0
    %2015 = vmatprep.subr.mxu0 0.0
    %2016 = vmatpush1.msra.mxu0 0.0
    %2017 = vmatprep.subr.mxu0 0.0
    %2018 = vmatpush1.msra.mxu0 0.0
    %2019 = vmatprep.subr.mxu0 0.0
    %2020 = vmatpush1.msra.mxu0 0.0
    %2021 = vmatprep.subr.mxu0 0.0
    %2022 = vmatpush1.msra.mxu0 0.0
    %2023 = vmatprep.subr.mxu0 0.0
    %2024 = vmatpush1.msra.mxu0 0.0
    %2025 = vmatprep.subr.mxu0 0.0
    %2026 = vmatpush1.msra.mxu0 0.0
    %2027 = vmatprep.subr.mxu0 0.0
    %2028 = vmatpush1.msra.mxu0 0.0
    %2029 = vmatprep.subr.mxu0 0.0
    %2030 = vmatpush1.msra.mxu0 0.0
    %2031 = vmatprep.subr.mxu0 0.0
    %2032 = vmatpush1.msra.mxu0 0.0
    %2033 = vmatprep.subr.mxu0 0.0
    %2034 = vmatpush1.msra.mxu0 0.0
    %2035 = vmatprep.subr.mxu0 0.0
    %2036 = vmatpush1.msra.mxu0 0.0
    %2037 = vmatprep.subr.mxu0 0.0
    %2038 = vmatpush1.msra.mxu0 0.0
    %2039 = vmatprep.subr.mxu0 0.0
    %2040 = vmatpush1.msra.mxu0 0.0
    %2041 = vmatprep.subr.mxu0 0.0
    %2042 = vmatpush1.msra.mxu0 0.0
    %2043 = vmatprep.subr.mxu0 0.0
    %2044 = vmatpush1.msra.mxu0 0.0
    %2045 = vmatprep.subr.mxu0 0.0
    %2046 = vmatpush1.msra.mxu0 0.0
    %2047 = vmatprep.subr.mxu0 0.0
    %2048 = vmatpush1.msra.mxu0 0.0
    %2049 = vmatprep.subr.mxu0 0.0
    %2050 = vmatpush1.msra.mxu0 0.0
    %2051 = vmatprep.subr.mxu0 0.0
    %2052 = vmatpush1.msra.mxu0 0.0
    %2053 = vmatprep.subr.mxu0 0.0
    %2054 = vmatpush1.msra.mxu0 0.0
    %2055 = vmatprep.subr.mxu0 0.0
    %2056 = vmatpush1.msra.mxu0 0.0
    %2057 = vmatprep.subr.mxu0 0.0
    %2058 = vmatpush1.msra.mxu0 0.0
    %2059 = vmatprep.subr.mxu0 0.0
    %2060 = vmatpush1.msra.mxu0 0.0
    %2061 = vmatprep.subr.mxu0 0.0
    %2062 = vmatpush1.msra.mxu0 0.0
    %2063 = vmatprep.subr.mxu0 0.0
    %2064 = vmatpush1.msra.mxu0 0.0
    %2065 = vmatprep.subr.mxu0 0.0
    %2066 = vmatpush1.msra.mxu0 0.0
    %2067 = vmatprep.mubr.f32.mxu0 0.0
    %2068 = vmatmul.mubr.f32.gmra.mrb[0].mxu0 %v1998
    %v2069 = vpop.f32.mrb[0].mxu0
    %v2070 = vadd.f32 0.0, %v2069
    %v2071 = vpop.f32.mrb[0].mxu0
    %2072 = vmatprep.mubr.f32.mxu0 0.0
    %2073 = vmatmul.mubr.f32.gmra.mrb[0].mxu0 %v2001
    %v2074 = vpop.f32.mrb[0].mxu0
    %v2075 = vadd.f32 0.0, %v2074
    %v2076 = vpop.f32.mrb[0].mxu0
    %2077 = vdwg.mxu0
    %v2078 = vadd.f32 %v1987, %v2070
    %v2079 = vadd.f32 %v1992, %v2075
    %s2080 = scalar_lea.vmem [#allocation13], 24
    %v2081 = vld [vmem:[%s2080] sm:$0xff]
    %v2083 = vsel %vm549, %v1535, 0
    %v2086 = vsel %vm549, %v1827, 0
    %2088 = vmatprep.subr.mxu0 0.0
    %2089 = vmatpush1.msra.mxu0 %v2081
    %2090 = vmatprep.subr.mxu0 0.0
    %2091 = vmatpush1.msra.mxu0 0.0
    %2092 = vmatprep.subr.mxu0 0.0
    %2093 = vmatpush1.msra.mxu0 0.0
    %2094 = vmatprep.subr.mxu0 0.0
    %2095 = vmatpush1.msra.mxu0 0.0
    %2096 = vmatprep.subr.mxu0 0.0
    %2097 = vmatpush1.msra.mxu0 0.0
    %2098 = vmatprep.subr.mxu0 0.0
    %2099 = vmatpush1.msra.mxu0 0.0
    %2100 = vmatprep.subr.mxu0 0.0
    %2101 = vmatpush1.msra.mxu0 0.0
    %2102 = vmatprep.subr.mxu0 0.0
    %2103 = vmatpush1.msra.mxu0 0.0
    %2104 = vmatprep.subr.mxu0 0.0
    %2105 = vmatpush1.msra.mxu0 0.0
    %2106 = vmatprep.subr.mxu0 0.0
    %2107 = vmatpush1.msra.mxu0 0.0
    %2108 = vmatprep.subr.mxu0 0.0
    %2109 = vmatpush1.msra.mxu0 0.0
    %2110 = vmatprep.subr.mxu0 0.0
    %2111 = vmatpush1.msra.mxu0 0.0
    %2112 = vmatprep.subr.mxu0 0.0
    %2113 = vmatpush1.msra.mxu0 0.0
    %2114 = vmatprep.subr.mxu0 0.0
    %2115 = vmatpush1.msra.mxu0 0.0
    %2116 = vmatprep.subr.mxu0 0.0
    %2117 = vmatpush1.msra.mxu0 0.0
    %2118 = vmatprep.subr.mxu0 0.0
    %2119 = vmatpush1.msra.mxu0 0.0
    %2120 = vmatprep.subr.mxu0 0.0
    %2121 = vmatpush1.msra.mxu0 0.0
    %2122 = vmatprep.subr.mxu0 0.0
    %2123 = vmatpush1.msra.mxu0 0.0
    %2124 = vmatprep.subr.mxu0 0.0
    %2125 = vmatpush1.msra.mxu0 0.0
    %2126 = vmatprep.subr.mxu0 0.0
    %2127 = vmatpush1.msra.mxu0 0.0
    %2128 = vmatprep.subr.mxu0 0.0
    %2129 = vmatpush1.msra.mxu0 0.0
    %2130 = vmatprep.subr.mxu0 0.0
    %2131 = vmatpush1.msra.mxu0 0.0
    %2132 = vmatprep.subr.mxu0 0.0
    %2133 = vmatpush1.msra.mxu0 0.0
    %2134 = vmatprep.subr.mxu0 0.0
    %2135 = vmatpush1.msra.mxu0 0.0
    %2136 = vmatprep.subr.mxu0 0.0
    %2137 = vmatpush1.msra.mxu0 0.0
    %2138 = vmatprep.subr.mxu0 0.0
    %2139 = vmatpush1.msra.mxu0 0.0
    %2140 = vmatprep.subr.mxu0 0.0
    %2141 = vmatpush1.msra.mxu0 0.0
    %2142 = vmatprep.subr.mxu0 0.0
    %2143 = vmatpush1.msra.mxu0 0.0
    %2144 = vmatprep.subr.mxu0 0.0
    %2145 = vmatpush1.msra.mxu0 0.0
    %2146 = vmatprep.subr.mxu0 0.0
    %2147 = vmatpush1.msra.mxu0 0.0
    %2148 = vmatprep.subr.mxu0 0.0
    %2149 = vmatpush1.msra.mxu0 0.0
    %2150 = vmatprep.subr.mxu0 0.0
    %2151 = vmatpush1.msra.mxu0 0.0
    %2152 = vmatprep.mubr.f32.mxu0 0.0
    %2153 = vmatmul.mubr.f32.gmra.mrb[0].mxu0 %v2083
    %v2154 = vpop.f32.mrb[0].mxu0
    %v2155 = vadd.f32 0.0, %v2154
    %v2156 = vpop.f32.mrb[0].mxu0
    %2157 = vmatprep.mubr.f32.mxu0 0.0
    %2158 = vmatmul.mubr.f32.gmra.mrb[0].mxu0 %v2086
    %v2159 = vpop.f32.mrb[0].mxu0
    %v2160 = vadd.f32 0.0, %v2159
    %v2161 = vpop.f32.mrb[0].mxu0
    %2162 = vdwg.mxu0
    %v2163 = vadd.f32 %v2078, %v2155
    %v2164 = vadd.f32 %v2079, %v2160
    %v2165 = vld [vmem:[#allocation14] sm:$0x1]
    %v2167 = vlaneseq
    %v2168 = vshrl.u32 %v2167, 7
    %v2169 = vsub.s32 0, %v2168
    %v2170 = vrot.slane %v2165, %v2169
    %v2172 = vadd.f32 %v2163, %v2170
    %v2173 = vadd.f32 %v2164, %v2170
    %v2174 = vadd.f32 %v166, %v2172
    %v2175 = vadd.f32 %v167, %v2173
    %v2176 = vsel %vm179, %v2174, 0.0
    %2177 = vadd.xlane.f32.xlu0 %v2176
    %v2178 = vpop.xlane.xlu0 %2177
    %v2179 = vsel %vm179, %v2175, 0.0
    %2180 = vadd.xlane.f32.xlu0 %v2179
    %v2181 = vpop.xlane.xlu0 %2180
    %v2182 = vrcp.pop 32.0
    %v2183 = vmul.f32 %v2178, %v2182
    %v2184 = vmul.f32 %v2181, %v2182
    %v2185 = vsub.f32 %v2174, %v2183
    %v2186 = vsub.f32 %v2175, %v2184
    %v2187 = vmul.f32 %v2185, %v2185
    %v2188 = vmul.f32 %v2186, %v2186
    %v2189 = vsel %vm179, %v2187, 0.0
    %2190 = vadd.xlane.f32.xlu0 %v2189
    %v2191 = vpop.xlane.xlu0 %2190
    %v2192 = vsel %vm179, %v2188, 0.0
    %2193 = vadd.xlane.f32.xlu0 %v2192
    %v2194 = vpop.xlane.xlu0 %2193
    %v2195 = vmul.f32 %v2191, %v2182
    %v2196 = vmul.f32 %v2194, %v2182
    %v2197 = vadd.f32 %v2195, 1e-05
    %v2198 = vadd.f32 %v2196, 1e-05
    %v2199 = vrsqrt.pop %v2197
    %v2200 = vrsqrt.pop %v2198
    %v2201 = vmul.f32 %v2185, %v2199
    %v2202 = vmul.f32 %v2186, %v2200
    %v2203 = vld [vmem:[#allocation16] sm:$0x1]
    %v2205 = vlaneseq
    %v2206 = vshrl.u32 %v2205, 7
    %v2207 = vsub.s32 0, %v2206
    %v2208 = vrot.slane %v2203, %v2207
    %v2210 = vmul.f32 %v2201, %v2208
    %v2211 = vmul.f32 %v2202, %v2208
    %v2212 = vld [vmem:[#allocation17] sm:$0x1]
    %v2214 = vlaneseq
    %v2215 = vshrl.u32 %v2214, 7
    %v2216 = vsub.s32 0, %v2215
    %v2217 = vrot.slane %v2212, %v2216
    %v2219 = vadd.f32 %v2210, %v2217
    %v2220 = vadd.f32 %v2211, %v2217
    %2221 = vst.msk [vmem:[#allocation19] sm:$0xff] %vm179, %v2219
    %2222 = vst.msk [vmem:[#allocation19 + $0x8] sm:$0xff] %vm179, %v2220
    // Predicated region
    $region82: #{tpu_custom_call.1} parent=1 // pred_check
      _
    $region83: #{tpu_custom_call.1} parent=1 // pred_check_branch
      %2224 = sbr.rel (0) target = $region85
    $region84: #{tpu_custom_call.1} parent=1 // pred_region
      %s2226 = ssub.s32 256, 256
      %2227 = vsyncadd [#allocation4], %s2226
      %s2228 = sshll.u32 [#allocation19], 4
      %s2229 = int_to_ptr.vmem [resolvable:$true] %s2228
      %2234 = dma.vmem_to_hbm [thread:$0]  %s2229, 256, %s10, [#allocation4], 128, 128, 8
    $region85: #{tpu_custom_call.1} parent=1 // pred_fallthru
      _
    // Predicated region
    $region86: #{tpu_custom_call.1} parent=1 // pred_check
      _
    $region87: #{tpu_custom_call.1} parent=1 // pred_check_branch
      %2236 = sbr.rel (0) target = $region89
    $region88: #{tpu_custom_call.1} parent=1 // pred_region
      %2237 = dma.done [#allocation4], 256
    $region89: #{tpu_custom_call.1} parent=1 // pred_fallthru
      _
    %2238 = vsyncpa [#allocation3], 1
    %2239 = vsyncpa [#allocation6], 1
    %2240 = vsyncpa [#allocation9], 1
    %2241 = vsyncpa [#allocation12], 1
    %2242 = vsyncpa [#allocation15], 1
    %2243 = vsyncpa [#allocation18], 1
    %2244 = vsyncpa [#allocation4], 1

</llo_original>
